<compile_context>
chip_gen: v6e
topology: v6e:2x2x1
jax: 0.10.0
libtpu: 0.0.40
codegen_flags: <defaults>
</compile_context>

<pallas_src>
import functools
import math

import jax
import jax.numpy as jnp
from jax import lax
from jax.experimental import pallas as pl
from jax.experimental.pallas import tpu as pltpu


def _round_up(x, m):
    return ((x + m - 1) // m) * m


def _vmem_budget_bytes():
    """Generation-aware scoped-VMEM budget: ~3/4 of physical VMEM
    (v5e/v6e 128 MiB -> 96 MiB, v7x 64 MiB/TC -> 48 MiB).  Safe fallback."""
    try:
        cap = int(pltpu.get_tpu_info().vmem_capacity_bytes)
    except Exception:
        cap = 64 * 1024 * 1024  # v7x-safe default
    return (cap * 3) // 4


def _pack_block_diagonal(weight, group):
    """(B, D, D) -> (B/group, group*D, group*D) block-diagonal weight tiles so
    `group` experts share one lane-dense 128-wide slab (off-diag blocks zero)."""
    B, D, _ = weight.shape
    if group == 1:
        return weight
    ng = B // group
    w = weight.reshape(ng, group, D, D)
    eye = jnp.eye(group, dtype=weight.dtype)
    packed = jnp.einsum('nirc,ij->nirjc', w, eye)      # zeros off the diagonal
    return packed.reshape(ng, group * D, group * D)


def _ebfe_kernel(x_ref, w_ref, b_ref, o_ref, *, n_groups, group_width):
    # x_ref: (tn, B*D)            row tile of the input (natural row-major layout)
    # w_ref: (n_groups, GW, GW)   block-diagonal expert-group weights, VMEM-resident
    # b_ref: (1, B*D)             all expert biases (f32), VMEM-resident
    # o_ref: (tn, B*D)            lane-dense output tile
    def step(g, lo):
        xg = x_ref[:, pl.ds(lo, group_width)]                      # lane-dense slice
        yg = jnp.dot(xg, w_ref[g], preferred_element_type=jnp.float32)
        yg = yg + b_ref[:, pl.ds(lo, group_width)]                 # (1, GW) broadcast
        # ReLU; softshrink(lambd=0) after ReLU is the identity -> omitted.
        o_ref[:, pl.ds(lo, group_width)] = jnp.maximum(yg, 0.0).astype(o_ref.dtype)

    if n_groups <= 16:
        # Short static unroll: 128-lane-aligned static slices, bounded live ranges.
        for g in range(n_groups):
            step(g, g * group_width)
    else:
        def body(g, carry):
            step(g, pl.multiple_of(g * group_width, group_width))
            return carry
        lax.fori_loop(0, n_groups, body, 0)


def ebfe_forward(x, weight, bias, *, cast_inputs_to=jnp.bfloat16, out_dtype=None,
                 max_rows_per_step=2048):
    """x: (..., B, D), weight: (B, D, D), bias: (B, D), with B == D == d_model.

    cast_inputs_to: streaming dtype for x / packed weights (default bf16 halves
    HBM traffic on this memory-bound kernel); accumulation stays f32 and the
    output keeps x's dtype unless out_dtype is given.
    """
    B, D, K = weight.shape
    assert B == D == K, "EBFE expects a (d, d, d) weight"
    orig_shape = x.shape
    assert orig_shape[-2] == B and orig_shape[-1] == D
    out_dtype = x.dtype if out_dtype is None else out_dtype

    lead = orig_shape[:-2]
    n = math.prod(lead) if lead else 1
    bd = B * D

    # ---- expert grouping: pack experts so each weight tile is 128-lane dense ----
    if D % 128 == 0:
        group = 1                              # each expert is already lane-dense
    elif 128 % D == 0 and B % (128 // D) == 0:
        group = 128 // D                       # e.g. 4 experts per tile at D=32
    else:
        group = 1                              # TODO(synk): odd D; correct but not lane-dense
    gw = group * D                             # group width (128 in the common case)
    ng = B // group

    compute_dtype = jnp.dtype(cast_inputs_to) if cast_inputs_to is not None else x.dtype

    # Free, transpose-less views of the natural row-major layout.
    x2 = x.reshape(n, bd).astype(compute_dtype)
    w_packed = _pack_block_diagonal(weight, group).astype(compute_dtype)
    bias2 = bias.reshape(1, bd).astype(jnp.float32)

    # ---- VMEM-budget-driven row tile --------------------------------------------
    x_b = jnp.dtype(compute_dtype).itemsize
    o_b = jnp.dtype(out_dtype).itemsize
    tile_align = 16 if x_b < 4 else 8
    vmem_budget = _vmem_budget_bytes()
    # Budget resident operands at 2 copies (worst case if single-buffering is
    # unavailable) plus a margin for Mosaic internal scratch.
    resident = 2 * (w_packed.size * w_packed.dtype.itemsize + bias2.size * 4)
    avail = vmem_budget - resident - (2 << 20)
    row_bytes = bd * 2 * (x_b + o_b)           # double-buffered x tile + out tile
    tn_budget = tile_align
    if avail > 0:
        tn_budget = max(tile_align, (avail // row_bytes // tile_align) * tile_align)
    tn_budget = min(tn_budget, max_rows_per_step)

    if n <= tn_budget:
        tn = n                                 # whole problem in one step, no padding
        # v7x has two TensorCores: give the "parallel" axis >= 2 steps when big enough.
        if n >= 4096 and (n // 2) % tile_align == 0:
            tn = n // 2
    else:
        # Prefer a tile that divides n exactly -> no jnp.pad HBM round-trip.
        tn = 0
        t = tn_budget
        floor = max(tile_align, 256)
        while t >= floor:
            if n % t == 0:
                tn = t
                break
            t -= tile_align
        if tn == 0:
            tn = tn_budget                     # rare fallback: pad the tail
    n_pad = _round_up(n, tn)
    if n_pad != n:
        x2 = jnp.pad(x2, ((0, n_pad - n), (0, 0)))

    grid = (n_pad // tn,)

    def build(resident_mode):
        def rspec(shape):
            idx = lambda i: (0,) * len(shape)
            if resident_mode is None:
                return pl.BlockSpec(shape, idx)
            return pl.BlockSpec(shape, idx, pipeline_mode=resident_mode)

        return pl.pallas_call(
            functools.partial(_ebfe_kernel, n_groups=ng, group_width=gw),
            out_shape=jax.ShapeDtypeStruct((n_pad, bd), out_dtype),
            grid_spec=pltpu.PrefetchScalarGridSpec(
                num_scalar_prefetch=0,
                grid=grid,
                in_specs=[
                    pl.BlockSpec((tn, bd), lambda i: (i, 0)),   # x row tile
                    rspec((ng, gw, gw)),                        # resident packed weights
                    rspec((1, bd)),                             # resident bias
                ],
                out_specs=pl.BlockSpec((tn, bd), lambda i: (i, 0)),
            ),
            compiler_params=pltpu.CompilerParams(
                dimension_semantics=("parallel",),
                vmem_limit_bytes=int(vmem_budget),
            ),
        )

    try:
        # Grid-constant operands don't need double-buffering; the saved VMEM goes
        # straight into a bigger row tile at larger d_model.
        out2 = build(pl.Buffered(1))(x2, w_packed, bias2)
    except Exception:
        # Older Pallas without pipeline_mode support: default double-buffering.
        out2 = build(None)(x2, w_packed, bias2)

    if n_pad != n:
        out2 = out2[:n]
    return out2.reshape(orig_shape)


def ebfe_reference(x, weight, bias):
    y = jnp.einsum('...bd,bdk->...bk', x, weight,
                   precision=jax.lax.Precision.HIGHEST) + bias
    y = jnp.maximum(y, 0.0)   # ReLU; softshrink(lambd=0.0) is the identity after ReLU
    return y


if __name__ == "__main__":
    d_model = 32
    key = jax.random.PRNGKey(0)
    k_w, k_b, k_x = jax.random.split(key, 3)

    # Deterministic "randn * 0.02" style parameters (as in the PyTorch module).
    weight = jax.random.normal(k_w, (d_model, d_model, d_model), jnp.float32) * 0.02
    bias = jax.random.normal(k_b, (d_model, d_model), jnp.float32) * 0.02

    # x: (batch=2, seq=4, B=d_model, D=d_model) hidden state fed to the EBFE block.
    x = jax.random.normal(k_x, (2, 4, d_model, d_model), jnp.float32)

    ref = ebfe_reference(x, weight, bias)

    # Default path: bf16 streaming, f32 accumulation, f32 output.
    out = jax.block_until_ready(ebfe_forward(x, weight, bias))
    assert out.shape == x.shape and out.dtype == x.dtype
    assert jnp.allclose(out, ref, atol=2e-2, rtol=2e-2), \
        float(jnp.max(jnp.abs(out - ref)))

    # Full-f32 streaming path for a tighter numerical check.
    out_f32 = jax.block_until_ready(ebfe_forward(x, weight, bias, cast_inputs_to=None))
    assert jnp.allclose(out_f32, ref, atol=5e-3, rtol=5e-3), \
        float(jnp.max(jnp.abs(out_f32 - ref)))

    print("KERNEL_OK")
</pallas_src>

<mosaic_0001>
module attributes {stable_mosaic.version = 11 : i64} {
  func.func @_ebfe_kernel(%arg0: i32, %arg1: memref<8x1024xbf16, #tpu.memory_space<vmem>>, %arg2: memref<8x128x128xbf16, #tpu.memory_space<vmem>>, %arg3: memref<1x1024xf32, #tpu.memory_space<vmem>>, %arg4: memref<8x1024xf32, #tpu.memory_space<vmem>>) attributes {dimension_semantics = [#tpu.dimension_semantics<parallel>], iteration_bounds = array<i64: 1>, scalar_prefetch = 0 : i64, scratch_operands = 0 : i64, tpu.core_type = #tpu.core_type<tc>, window_params = [{transform_indices = @transform_0, window_bounds = array<i64: 8, 1024>}, {pipeline_mode = #tpu.pipeline_mode<synchronous>, transform_indices = @transform_1, window_bounds = array<i64: 8, 128, 128>}, {pipeline_mode = #tpu.pipeline_mode<synchronous>, transform_indices = @transform_2, window_bounds = array<i64: 1, 1024>}, {transform_indices = @transform_3, window_bounds = array<i64: 8, 1024>}]} {
    %c0 = arith.constant 0 : index
    %c0_0 = arith.constant 0 : index
    %0 = vector.load %arg1[%c0, %c0_0] : memref<8x1024xbf16, #tpu.memory_space<vmem>>, vector<8x128xbf16>
    %c0_1 = arith.constant 0 : index
    %c0_2 = arith.constant 0 : index
    %c0_3 = arith.constant 0 : index
    %1 = vector.load %arg2[%c0_1, %c0_2, %c0_3] : memref<8x128x128xbf16, #tpu.memory_space<vmem>>, vector<1x128x128xbf16>
    %2 = vector.shape_cast %1 : vector<1x128x128xbf16> to vector<128x128xbf16>
    %cst = arith.constant dense<0.000000e+00> : vector<8x128xf32>
    %3 = tpu.matmul %0, %2, %cst {dimension_numbers = #tpu.dot_dimension_numbers<[1], [0], [0], [1], [0, 0, 1, 1], [], []>} : vector<8x128xbf16>, vector<128x128xbf16>, vector<8x128xf32> -> vector<8x128xf32>
    %c0_4 = arith.constant 0 : index
    %c0_5 = arith.constant 0 : index
    %4 = vector.load %arg3[%c0_4, %c0_5] : memref<1x1024xf32, #tpu.memory_space<vmem>>, vector<1x128xf32>
    %5 = vector.broadcast %4 : vector<1x128xf32> to vector<8x128xf32>
    %6 = arith.addf %3, %5 : vector<8x128xf32>
    %cst_6 = arith.constant 0.000000e+00 : f32
    %7 = vector.broadcast %cst_6 : f32 to vector<8x128xf32>
    %8 = arith.maximumf %6, %7 : vector<8x128xf32>
    %c0_7 = arith.constant 0 : index
    %c0_8 = arith.constant 0 : index
    %9 = vector.load %arg4[%c0_7, %c0_8] : memref<8x1024xf32, #tpu.memory_space<vmem>>, vector<8x128xf32>
    tpu.vector_store %arg4[%c0_7, %c0_8], %8 {strides = array<i32>} : memref<8x1024xf32, #tpu.memory_space<vmem>>, vector<8x128xf32>,
    %c0_9 = arith.constant 0 : index
    %c128 = arith.constant 128 : index
    %10 = vector.load %arg1[%c0_9, %c128] : memref<8x1024xbf16, #tpu.memory_space<vmem>>, vector<8x128xbf16>
    %c1 = arith.constant 1 : index
    %c0_10 = arith.constant 0 : index
    %c0_11 = arith.constant 0 : index
    %11 = vector.load %arg2[%c1, %c0_10, %c0_11] : memref<8x128x128xbf16, #tpu.memory_space<vmem>>, vector<1x128x128xbf16>
    %12 = vector.shape_cast %11 : vector<1x128x128xbf16> to vector<128x128xbf16>
    %cst_12 = arith.constant dense<0.000000e+00> : vector<8x128xf32>
    %13 = tpu.matmul %10, %12, %cst_12 {dimension_numbers = #tpu.dot_dimension_numbers<[1], [0], [0], [1], [0, 0, 1, 1], [], []>} : vector<8x128xbf16>, vector<128x128xbf16>, vector<8x128xf32> -> vector<8x128xf32>
    %c0_13 = arith.constant 0 : index
    %c128_14 = arith.constant 128 : index
    %14 = vector.load %arg3[%c0_13, %c128_14] : memref<1x1024xf32, #tpu.memory_space<vmem>>, vector<1x128xf32>
    %15 = vector.broadcast %14 : vector<1x128xf32> to vector<8x128xf32>
    %16 = arith.addf %13, %15 : vector<8x128xf32>
    %cst_15 = arith.constant 0.000000e+00 : f32
    %17 = vector.broadcast %cst_15 : f32 to vector<8x128xf32>
    %18 = arith.maximumf %16, %17 : vector<8x128xf32>
    %c0_16 = arith.constant 0 : index
    %c128_17 = arith.constant 128 : index
    %19 = vector.load %arg4[%c0_16, %c128_17] : memref<8x1024xf32, #tpu.memory_space<vmem>>, vector<8x128xf32>
    tpu.vector_store %arg4[%c0_16, %c128_17], %18 {strides = array<i32>} : memref<8x1024xf32, #tpu.memory_space<vmem>>, vector<8x128xf32>,
    %c0_18 = arith.constant 0 : index
    %c256 = arith.constant 256 : index
    %20 = vector.load %arg1[%c0_18, %c256] : memref<8x1024xbf16, #tpu.memory_space<vmem>>, vector<8x128xbf16>
    %c2 = arith.constant 2 : index
    %c0_19 = arith.constant 0 : index
    %c0_20 = arith.constant 0 : index
    %21 = vector.load %arg2[%c2, %c0_19, %c0_20] : memref<8x128x128xbf16, #tpu.memory_space<vmem>>, vector<1x128x128xbf16>
    %22 = vector.shape_cast %21 : vector<1x128x128xbf16> to vector<128x128xbf16>
    %cst_21 = arith.constant dense<0.000000e+00> : vector<8x128xf32>
    %23 = tpu.matmul %20, %22, %cst_21 {dimension_numbers = #tpu.dot_dimension_numbers<[1], [0], [0], [1], [0, 0, 1, 1], [], []>} : vector<8x128xbf16>, vector<128x128xbf16>, vector<8x128xf32> -> vector<8x128xf32>
    %c0_22 = arith.constant 0 : index
    %c256_23 = arith.constant 256 : index
    %24 = vector.load %arg3[%c0_22, %c256_23] : memref<1x1024xf32, #tpu.memory_space<vmem>>, vector<1x128xf32>
    %25 = vector.broadcast %24 : vector<1x128xf32> to vector<8x128xf32>
    %26 = arith.addf %23, %25 : vector<8x128xf32>
    %cst_24 = arith.constant 0.000000e+00 : f32
    %27 = vector.broadcast %cst_24 : f32 to vector<8x128xf32>
    %28 = arith.maximumf %26, %27 : vector<8x128xf32>
    %c0_25 = arith.constant 0 : index
    %c256_26 = arith.constant 256 : index
    %29 = vector.load %arg4[%c0_25, %c256_26] : memref<8x1024xf32, #tpu.memory_space<vmem>>, vector<8x128xf32>
    tpu.vector_store %arg4[%c0_25, %c256_26], %28 {strides = array<i32>} : memref<8x1024xf32, #tpu.memory_space<vmem>>, vector<8x128xf32>,
    %c0_27 = arith.constant 0 : index
    %c384 = arith.constant 384 : index
    %30 = vector.load %arg1[%c0_27, %c384] : memref<8x1024xbf16, #tpu.memory_space<vmem>>, vector<8x128xbf16>
    %c3 = arith.constant 3 : index
    %c0_28 = arith.constant 0 : index
    %c0_29 = arith.constant 0 : index
    %31 = vector.load %arg2[%c3, %c0_28, %c0_29] : memref<8x128x128xbf16, #tpu.memory_space<vmem>>, vector<1x128x128xbf16>
    %32 = vector.shape_cast %31 : vector<1x128x128xbf16> to vector<128x128xbf16>
    %cst_30 = arith.constant dense<0.000000e+00> : vector<8x128xf32>
    %33 = tpu.matmul %30, %32, %cst_30 {dimension_numbers = #tpu.dot_dimension_numbers<[1], [0], [0], [1], [0, 0, 1, 1], [], []>} : vector<8x128xbf16>, vector<128x128xbf16>, vector<8x128xf32> -> vector<8x128xf32>
    %c0_31 = arith.constant 0 : index
    %c384_32 = arith.constant 384 : index
    %34 = vector.load %arg3[%c0_31, %c384_32] : memref<1x1024xf32, #tpu.memory_space<vmem>>, vector<1x128xf32>
    %35 = vector.broadcast %34 : vector<1x128xf32> to vector<8x128xf32>
    %36 = arith.addf %33, %35 : vector<8x128xf32>
    %cst_33 = arith.constant 0.000000e+00 : f32
    %37 = vector.broadcast %cst_33 : f32 to vector<8x128xf32>
    %38 = arith.maximumf %36, %37 : vector<8x128xf32>
    %c0_34 = arith.constant 0 : index
    %c384_35 = arith.constant 384 : index
    %39 = vector.load %arg4[%c0_34, %c384_35] : memref<8x1024xf32, #tpu.memory_space<vmem>>, vector<8x128xf32>
    tpu.vector_store %arg4[%c0_34, %c384_35], %38 {strides = array<i32>} : memref<8x1024xf32, #tpu.memory_space<vmem>>, vector<8x128xf32>,
    %c0_36 = arith.constant 0 : index
    %c512 = arith.constant 512 : index
    %40 = vector.load %arg1[%c0_36, %c512] : memref<8x1024xbf16, #tpu.memory_space<vmem>>, vector<8x128xbf16>
    %c4 = arith.constant 4 : index
    %c0_37 = arith.constant 0 : index
    %c0_38 = arith.constant 0 : index
    %41 = vector.load %arg2[%c4, %c0_37, %c0_38] : memref<8x128x128xbf16, #tpu.memory_space<vmem>>, vector<1x128x128xbf16>
    %42 = vector.shape_cast %41 : vector<1x128x128xbf16> to vector<128x128xbf16>
    %cst_39 = arith.constant dense<0.000000e+00> : vector<8x128xf32>
    %43 = tpu.matmul %40, %42, %cst_39 {dimension_numbers = #tpu.dot_dimension_numbers<[1], [0], [0], [1], [0, 0, 1, 1], [], []>} : vector<8x128xbf16>, vector<128x128xbf16>, vector<8x128xf32> -> vector<8x128xf32>
    %c0_40 = arith.constant 0 : index
    %c512_41 = arith.constant 512 : index
    %44 = vector.load %arg3[%c0_40, %c512_41] : memref<1x1024xf32, #tpu.memory_space<vmem>>, vector<1x128xf32>
    %45 = vector.broadcast %44 : vector<1x128xf32> to vector<8x128xf32>
    %46 = arith.addf %43, %45 : vector<8x128xf32>
    %cst_42 = arith.constant 0.000000e+00 : f32
    %47 = vector.broadcast %cst_42 : f32 to vector<8x128xf32>
    %48 = arith.maximumf %46, %47 : vector<8x128xf32>
    %c0_43 = arith.constant 0 : index
    %c512_44 = arith.constant 512 : index
    %49 = vector.load %arg4[%c0_43, %c512_44] : memref<8x1024xf32, #tpu.memory_space<vmem>>, vector<8x128xf32>
    tpu.vector_store %arg4[%c0_43, %c512_44], %48 {strides = array<i32>} : memref<8x1024xf32, #tpu.memory_space<vmem>>, vector<8x128xf32>,
    %c0_45 = arith.constant 0 : index
    %c640 = arith.constant 640 : index
    %50 = vector.load %arg1[%c0_45, %c640] : memref<8x1024xbf16, #tpu.memory_space<vmem>>, vector<8x128xbf16>
    %c5 = arith.constant 5 : index
    %c0_46 = arith.constant 0 : index
    %c0_47 = arith.constant 0 : index
    %51 = vector.load %arg2[%c5, %c0_46, %c0_47] : memref<8x128x128xbf16, #tpu.memory_space<vmem>>, vector<1x128x128xbf16>
    %52 = vector.shape_cast %51 : vector<1x128x128xbf16> to vector<128x128xbf16>
    %cst_48 = arith.constant dense<0.000000e+00> : vector<8x128xf32>
    %53 = tpu.matmul %50, %52, %cst_48 {dimension_numbers = #tpu.dot_dimension_numbers<[1], [0], [0], [1], [0, 0, 1, 1], [], []>} : vector<8x128xbf16>, vector<128x128xbf16>, vector<8x128xf32> -> vector<8x128xf32>
    %c0_49 = arith.constant 0 : index
    %c640_50 = arith.constant 640 : index
    %54 = vector.load %arg3[%c0_49, %c640_50] : memref<1x1024xf32, #tpu.memory_space<vmem>>, vector<1x128xf32>
    %55 = vector.broadcast %54 : vector<1x128xf32> to vector<8x128xf32>
    %56 = arith.addf %53, %55 : vector<8x128xf32>
    %cst_51 = arith.constant 0.000000e+00 : f32
    %57 = vector.broadcast %cst_51 : f32 to vector<8x128xf32>
    %58 = arith.maximumf %56, %57 : vector<8x128xf32>
    %c0_52 = arith.constant 0 : index
    %c640_53 = arith.constant 640 : index
    %59 = vector.load %arg4[%c0_52, %c640_53] : memref<8x1024xf32, #tpu.memory_space<vmem>>, vector<8x128xf32>
    tpu.vector_store %arg4[%c0_52, %c640_53], %58 {strides = array<i32>} : memref<8x1024xf32, #tpu.memory_space<vmem>>, vector<8x128xf32>,
    %c0_54 = arith.constant 0 : index
    %c768 = arith.constant 768 : index
    %60 = vector.load %arg1[%c0_54, %c768] : memref<8x1024xbf16, #tpu.memory_space<vmem>>, vector<8x128xbf16>
    %c6 = arith.constant 6 : index
    %c0_55 = arith.constant 0 : index
    %c0_56 = arith.constant 0 : index
    %61 = vector.load %arg2[%c6, %c0_55, %c0_56] : memref<8x128x128xbf16, #tpu.memory_space<vmem>>, vector<1x128x128xbf16>
    %62 = vector.shape_cast %61 : vector<1x128x128xbf16> to vector<128x128xbf16>
    %cst_57 = arith.constant dense<0.000000e+00> : vector<8x128xf32>
    %63 = tpu.matmul %60, %62, %cst_57 {dimension_numbers = #tpu.dot_dimension_numbers<[1], [0], [0], [1], [0, 0, 1, 1], [], []>} : vector<8x128xbf16>, vector<128x128xbf16>, vector<8x128xf32> -> vector<8x128xf32>
    %c0_58 = arith.constant 0 : index
    %c768_59 = arith.constant 768 : index
    %64 = vector.load %arg3[%c0_58, %c768_59] : memref<1x1024xf32, #tpu.memory_space<vmem>>, vector<1x128xf32>
    %65 = vector.broadcast %64 : vector<1x128xf32> to vector<8x128xf32>
    %66 = arith.addf %63, %65 : vector<8x128xf32>
    %cst_60 = arith.constant 0.000000e+00 : f32
    %67 = vector.broadcast %cst_60 : f32 to vector<8x128xf32>
    %68 = arith.maximumf %66, %67 : vector<8x128xf32>
    %c0_61 = arith.constant 0 : index
    %c768_62 = arith.constant 768 : index
    %69 = vector.load %arg4[%c0_61, %c768_62] : memref<8x1024xf32, #tpu.memory_space<vmem>>, vector<8x128xf32>
    tpu.vector_store %arg4[%c0_61, %c768_62], %68 {strides = array<i32>} : memref<8x1024xf32, #tpu.memory_space<vmem>>, vector<8x128xf32>,
    %c0_63 = arith.constant 0 : index
    %c896 = arith.constant 896 : index
    %70 = vector.load %arg1[%c0_63, %c896] : memref<8x1024xbf16, #tpu.memory_space<vmem>>, vector<8x128xbf16>
    %c7 = arith.constant 7 : index
    %c0_64 = arith.constant 0 : index
    %c0_65 = arith.constant 0 : index
    %71 = vector.load %arg2[%c7, %c0_64, %c0_65] : memref<8x128x128xbf16, #tpu.memory_space<vmem>>, vector<1x128x128xbf16>
    %72 = vector.shape_cast %71 : vector<1x128x128xbf16> to vector<128x128xbf16>
    %cst_66 = arith.constant dense<0.000000e+00> : vector<8x128xf32>
    %73 = tpu.matmul %70, %72, %cst_66 {dimension_numbers = #tpu.dot_dimension_numbers<[1], [0], [0], [1], [0, 0, 1, 1], [], []>} : vector<8x128xbf16>, vector<128x128xbf16>, vector<8x128xf32> -> vector<8x128xf32>
    %c0_67 = arith.constant 0 : index
    %c896_68 = arith.constant 896 : index
    %74 = vector.load %arg3[%c0_67, %c896_68] : memref<1x1024xf32, #tpu.memory_space<vmem>>, vector<1x128xf32>
    %75 = vector.broadcast %74 : vector<1x128xf32> to vector<8x128xf32>
    %76 = arith.addf %73, %75 : vector<8x128xf32>
    %cst_69 = arith.constant 0.000000e+00 : f32
    %77 = vector.broadcast %cst_69 : f32 to vector<8x128xf32>
    %78 = arith.maximumf %76, %77 : vector<8x128xf32>
    %c0_70 = arith.constant 0 : index
    %c896_71 = arith.constant 896 : index
    %79 = vector.load %arg4[%c0_70, %c896_71] : memref<8x1024xf32, #tpu.memory_space<vmem>>, vector<8x128xf32>
    tpu.vector_store %arg4[%c0_70, %c896_71], %78 {strides = array<i32>} : memref<8x1024xf32, #tpu.memory_space<vmem>>, vector<8x128xf32>,
    return
  }
  func.func @transform_0(%arg0: i32) -> (i32, i32) {
    %c0_i32 = arith.constant 0 : i32
    %c0_i32_0 = arith.constant 0 : i32
    return %arg0, %c0_i32 : i32, i32
  }
  func.func @transform_1(%arg0: i32) -> (i32, i32, i32) {
    %c0_i32 = arith.constant 0 : i32
    %c0_i32_0 = arith.constant 0 : i32
    %c0_i32_1 = arith.constant 0 : i32
    %c0_i32_2 = arith.constant 0 : i32
    return %c0_i32, %c0_i32_0, %c0_i32_1 : i32, i32, i32
  }
  func.func @transform_2(%arg0: i32) -> (i32, i32) {
    %c0_i32 = arith.constant 0 : i32
    %c0_i32_0 = arith.constant 0 : i32
    %c0_i32_1 = arith.constant 0 : i32
    return %c0_i32, %c0_i32_0 : i32, i32
  }
  func.func @transform_3(%arg0: i32) -> (i32, i32) {
    %c0_i32 = arith.constant 0 : i32
    %c0_i32_0 = arith.constant 0 : i32
    return %arg0, %c0_i32 : i32, i32
  }
}

module attributes {stable_mosaic.version = 11 : i64} {
  func.func @_ebfe_kernel(%arg0: i32, %arg1: memref<8x1024xbf16, #tpu.memory_space<vmem>>, %arg2: memref<8x128x128xbf16, #tpu.memory_space<vmem>>, %arg3: memref<1x1024xf32, #tpu.memory_space<vmem>>, %arg4: memref<8x1024xf32, #tpu.memory_space<vmem>>) attributes {dimension_semantics = [#tpu.dimension_semantics<parallel>], iteration_bounds = array<i64: 1>, scalar_prefetch = 0 : i64, scratch_operands = 0 : i64, tpu.core_type = #tpu.core_type<tc>, window_params = [{transform_indices = @transform_0, window_bounds = array<i64: 8, 1024>}, {pipeline_mode = #tpu.pipeline_mode<synchronous>, transform_indices = @transform_1, window_bounds = array<i64: 8, 128, 128>}, {pipeline_mode = #tpu.pipeline_mode<synchronous>, transform_indices = @transform_2, window_bounds = array<i64: 1, 1024>}, {transform_indices = @transform_3, window_bounds = array<i64: 8, 1024>}]} {
    %c0 = arith.constant 0 : index
    %c0_0 = arith.constant 0 : index
    %0 = vector.load %arg1[%c0, %c0_0] : memref<8x1024xbf16, #tpu.memory_space<vmem>>, vector<8x128xbf16>
    %c0_1 = arith.constant 0 : index
    %c0_2 = arith.constant 0 : index
    %c0_3 = arith.constant 0 : index
    %1 = vector.load %arg2[%c0_1, %c0_2, %c0_3] : memref<8x128x128xbf16, #tpu.memory_space<vmem>>, vector<1x128x128xbf16>
    %2 = vector.shape_cast %1 : vector<1x128x128xbf16> to vector<128x128xbf16>
    %cst = arith.constant dense<0.000000e+00> : vector<8x128xf32>
    %3 = tpu.matmul %0, %2, %cst {dimension_numbers = #tpu.dot_dimension_numbers<[1], [0], [0], [1], [0, 0, 1, 1], [], []>} : vector<8x128xbf16>, vector<128x128xbf16>, vector<8x128xf32> -> vector<8x128xf32>
    %c0_4 = arith.constant 0 : index
    %c0_5 = arith.constant 0 : index
    %4 = vector.load %arg3[%c0_4, %c0_5] : memref<1x1024xf32, #tpu.memory_space<vmem>>, vector<1x128xf32>
    %5 = vector.broadcast %4 : vector<1x128xf32> to vector<8x128xf32>
    %6 = arith.addf %3, %5 : vector<8x128xf32>
    %cst_6 = arith.constant 0.000000e+00 : f32
    %7 = vector.broadcast %cst_6 : f32 to vector<8x128xf32>
    %8 = arith.maximumf %6, %7 : vector<8x128xf32>
    %c0_7 = arith.constant 0 : index
    %c0_8 = arith.constant 0 : index
    %9 = vector.load %arg4[%c0_7, %c0_8] : memref<8x1024xf32, #tpu.memory_space<vmem>>, vector<8x128xf32>
    tpu.vector_store %arg4[%c0_7, %c0_8], %8 {strides = array<i32>} : memref<8x1024xf32, #tpu.memory_space<vmem>>, vector<8x128xf32>,
    %c0_9 = arith.constant 0 : index
    %c128 = arith.constant 128 : index
    %10 = vector.load %arg1[%c0_9, %c128] : memref<8x1024xbf16, #tpu.memory_space<vmem>>, vector<8x128xbf16>
    %c1 = arith.constant 1 : index
    %c0_10 = arith.constant 0 : index
    %c0_11 = arith.constant 0 : index
    %11 = vector.load %arg2[%c1, %c0_10, %c0_11] : memref<8x128x128xbf16, #tpu.memory_space<vmem>>, vector<1x128x128xbf16>
    %12 = vector.shape_cast %11 : vector<1x128x128xbf16> to vector<128x128xbf16>
    %cst_12 = arith.constant dense<0.000000e+00> : vector<8x128xf32>
    %13 = tpu.matmul %10, %12, %cst_12 {dimension_numbers = #tpu.dot_dimension_numbers<[1], [0], [0], [1], [0, 0, 1, 1], [], []>} : vector<8x128xbf16>, vector<128x128xbf16>, vector<8x128xf32> -> vector<8x128xf32>
    %c0_13 = arith.constant 0 : index
    %c128_14 = arith.constant 128 : index
    %14 = vector.load %arg3[%c0_13, %c128_14] : memref<1x1024xf32, #tpu.memory_space<vmem>>, vector<1x128xf32>
    %15 = vector.broadcast %14 : vector<1x128xf32> to vector<8x128xf32>
    %16 = arith.addf %13, %15 : vector<8x128xf32>
    %cst_15 = arith.constant 0.000000e+00 : f32
    %17 = vector.broadcast %cst_15 : f32 to vector<8x128xf32>
    %18 = arith.maximumf %16, %17 : vector<8x128xf32>
    %c0_16 = arith.constant 0 : index
    %c128_17 = arith.constant 128 : index
    %19 = vector.load %arg4[%c0_16, %c128_17] : memref<8x1024xf32, #tpu.memory_space<vmem>>, vector<8x128xf32>
    tpu.vector_store %arg4[%c0_16, %c128_17], %18 {strides = array<i32>} : memref<8x1024xf32, #tpu.memory_space<vmem>>, vector<8x128xf32>,
    %c0_18 = arith.constant 0 : index
    %c256 = arith.constant 256 : index
    %20 = vector.load %arg1[%c0_18, %c256] : memref<8x1024xbf16, #tpu.memory_space<vmem>>, vector<8x128xbf16>
    %c2 = arith.constant 2 : index
    %c0_19 = arith.constant 0 : index
    %c0_20 = arith.constant 0 : index
    %21 = vector.load %arg2[%c2, %c0_19, %c0_20] : memref<8x128x128xbf16, #tpu.memory_space<vmem>>, vector<1x128x128xbf16>
    %22 = vector.shape_cast %21 : vector<1x128x128xbf16> to vector<128x128xbf16>
    %cst_21 = arith.constant dense<0.000000e+00> : vector<8x128xf32>
    %23 = tpu.matmul %20, %22, %cst_21 {dimension_numbers = #tpu.dot_dimension_numbers<[1], [0], [0], [1], [0, 0, 1, 1], [], []>} : vector<8x128xbf16>, vector<128x128xbf16>, vector<8x128xf32> -> vector<8x128xf32>
    %c0_22 = arith.constant 0 : index
    %c256_23 = arith.constant 256 : index
    %24 = vector.load %arg3[%c0_22, %c256_23] : memref<1x1024xf32, #tpu.memory_space<vmem>>, vector<1x128xf32>
    %25 = vector.broadcast %24 : vector<1x128xf32> to vector<8x128xf32>
    %26 = arith.addf %23, %25 : vector<8x128xf32>
    %cst_24 = arith.constant 0.000000e+00 : f32
    %27 = vector.broadcast %cst_24 : f32 to vector<8x128xf32>
    %28 = arith.maximumf %26, %27 : vector<8x128xf32>
    %c0_25 = arith.constant 0 : index
    %c256_26 = arith.constant 256 : index
    %29 = vector.load %arg4[%c0_25, %c256_26] : memref<8x1024xf32, #tpu.memory_space<vmem>>, vector<8x128xf32>
    tpu.vector_store %arg4[%c0_25, %c256_26], %28 {strides = array<i32>} : memref<8x1024xf32, #tpu.memory_space<vmem>>, vector<8x128xf32>,
    %c0_27 = arith.constant 0 : index
    %c384 = arith.constant 384 : index
    %30 = vector.load %arg1[%c0_27, %c384] : memref<8x1024xbf16, #tpu.memory_space<vmem>>, vector<8x128xbf16>
    %c3 = arith.constant 3 : index
    %c0_28 = arith.constant 0 : index
    %c0_29 = arith.constant 0 : index
    %31 = vector.load %arg2[%c3, %c0_28, %c0_29] : memref<8x128x128xbf16, #tpu.memory_space<vmem>>, vector<1x128x128xbf16>
    %32 = vector.shape_cast %31 : vector<1x128x128xbf16> to vector<128x128xbf16>
    %cst_30 = arith.constant dense<0.000000e+00> : vector<8x128xf32>
    %33 = tpu.matmul %30, %32, %cst_30 {dimension_numbers = #tpu.dot_dimension_numbers<[1], [0], [0], [1], [0, 0, 1, 1], [], []>} : vector<8x128xbf16>, vector<128x128xbf16>, vector<8x128xf32> -> vector<8x128xf32>
    %c0_31 = arith.constant 0 : index
    %c384_32 = arith.constant 384 : index
    %34 = vector.load %arg3[%c0_31, %c384_32] : memref<1x1024xf32, #tpu.memory_space<vmem>>, vector<1x128xf32>
    %35 = vector.broadcast %34 : vector<1x128xf32> to vector<8x128xf32>
    %36 = arith.addf %33, %35 : vector<8x128xf32>
    %cst_33 = arith.constant 0.000000e+00 : f32
    %37 = vector.broadcast %cst_33 : f32 to vector<8x128xf32>
    %38 = arith.maximumf %36, %37 : vector<8x128xf32>
    %c0_34 = arith.constant 0 : index
    %c384_35 = arith.constant 384 : index
    %39 = vector.load %arg4[%c0_34, %c384_35] : memref<8x1024xf32, #tpu.memory_space<vmem>>, vector<8x128xf32>
    tpu.vector_store %arg4[%c0_34, %c384_35], %38 {strides = array<i32>} : memref<8x1024xf32, #tpu.memory_space<vmem>>, vector<8x128xf32>,
    %c0_36 = arith.constant 0 : index
    %c512 = arith.constant 512 : index
    %40 = vector.load %arg1[%c0_36, %c512] : memref<8x1024xbf16, #tpu.memory_space<vmem>>, vector<8x128xbf16>
    %c4 = arith.constant 4 : index
    %c0_37 = arith.constant 0 : index
    %c0_38 = arith.constant 0 : index
    %41 = vector.load %arg2[%c4, %c0_37, %c0_38] : memref<8x128x128xbf16, #tpu.memory_space<vmem>>, vector<1x128x128xbf16>
    %42 = vector.shape_cast %41 : vector<1x128x128xbf16> to vector<128x128xbf16>
    %cst_39 = arith.constant dense<0.000000e+00> : vector<8x128xf32>
    %43 = tpu.matmul %40, %42, %cst_39 {dimension_numbers = #tpu.dot_dimension_numbers<[1], [0], [0], [1], [0, 0, 1, 1], [], []>} : vector<8x128xbf16>, vector<128x128xbf16>, vector<8x128xf32> -> vector<8x128xf32>
    %c0_40 = arith.constant 0 : index
    %c512_41 = arith.constant 512 : index
    %44 = vector.load %arg3[%c0_40, %c512_41] : memref<1x1024xf32, #tpu.memory_space<vmem>>, vector<1x128xf32>
    %45 = vector.broadcast %44 : vector<1x128xf32> to vector<8x128xf32>
    %46 = arith.addf %43, %45 : vector<8x128xf32>
    %cst_42 = arith.constant 0.000000e+00 : f32
    %47 = vector.broadcast %cst_42 : f32 to vector<8x128xf32>
    %48 = arith.maximumf %46, %47 : vector<8x128xf32>
    %c0_43 = arith.constant 0 : index
    %c512_44 = arith.constant 512 : index
    %49 = vector.load %arg4[%c0_43, %c512_44] : memref<8x1024xf32, #tpu.memory_space<vmem>>, vector<8x128xf32>
    tpu.vector_store %arg4[%c0_43, %c512_44], %48 {strides = array<i32>} : memref<8x1024xf32, #tpu.memory_space<vmem>>, vector<8x128xf32>,
    %c0_45 = arith.constant 0 : index
    %c640 = arith.constant 640 : index
    %50 = vector.load %arg1[%c0_45, %c640] : memref<8x1024xbf16, #tpu.memory_space<vmem>>, vector<8x128xbf16>
    %c5 = arith.constant 5 : index
    %c0_46 = arith.constant 0 : index
    %c0_47 = arith.constant 0 : index
    %51 = vector.load %arg2[%c5, %c0_46, %c0_47] : memref<8x128x128xbf16, #tpu.memory_space<vmem>>, vector<1x128x128xbf16>
    %52 = vector.shape_cast %51 : vector<1x128x128xbf16> to vector<128x128xbf16>
    %cst_48 = arith.constant dense<0.000000e+00> : vector<8x128xf32>
    %53 = tpu.matmul %50, %52, %cst_48 {dimension_numbers = #tpu.dot_dimension_numbers<[1], [0], [0], [1], [0, 0, 1, 1], [], []>} : vector<8x128xbf16>, vector<128x128xbf16>, vector<8x128xf32> -> vector<8x128xf32>
    %c0_49 = arith.constant 0 : index
    %c640_50 = arith.constant 640 : index
    %54 = vector.load %arg3[%c0_49, %c640_50] : memref<1x1024xf32, #tpu.memory_space<vmem>>, vector<1x128xf32>
    %55 = vector.broadcast %54 : vector<1x128xf32> to vector<8x128xf32>
    %56 = arith.addf %53, %55 : vector<8x128xf32>
    %cst_51 = arith.constant 0.000000e+00 : f32
    %57 = vector.broadcast %cst_51 : f32 to vector<8x128xf32>
    %58 = arith.maximumf %56, %57 : vector<8x128xf32>
    %c0_52 = arith.constant 0 : index
    %c640_53 = arith.constant 640 : index
    %59 = vector.load %arg4[%c0_52, %c640_53] : memref<8x1024xf32, #tpu.memory_space<vmem>>, vector<8x128xf32>
    tpu.vector_store %arg4[%c0_52, %c640_53], %58 {strides = array<i32>} : memref<8x1024xf32, #tpu.memory_space<vmem>>, vector<8x128xf32>,
    %c0_54 = arith.constant 0 : index
    %c768 = arith.constant 768 : index
    %60 = vector.load %arg1[%c0_54, %c768] : memref<8x1024xbf16, #tpu.memory_space<vmem>>, vector<8x128xbf16>
    %c6 = arith.constant 6 : index
    %c0_55 = arith.constant 0 : index
    %c0_56 = arith.constant 0 : index
    %61 = vector.load %arg2[%c6, %c0_55, %c0_56] : memref<8x128x128xbf16, #tpu.memory_space<vmem>>, vector<1x128x128xbf16>
    %62 = vector.shape_cast %61 : vector<1x128x128xbf16> to vector<128x128xbf16>
    %cst_57 = arith.constant dense<0.000000e+00> : vector<8x128xf32>
    %63 = tpu.matmul %60, %62, %cst_57 {dimension_numbers = #tpu.dot_dimension_numbers<[1], [0], [0], [1], [0, 0, 1, 1], [], []>} : vector<8x128xbf16>, vector<128x128xbf16>, vector<8x128xf32> -> vector<8x128xf32>
    %c0_58 = arith.constant 0 : index
    %c768_59 = arith.constant 768 : index
    %64 = vector.load %arg3[%c0_58, %c768_59] : memref<1x1024xf32, #tpu.memory_space<vmem>>, vector<1x128xf32>
    %65 = vector.broadcast %64 : vector<1x128xf32> to vector<8x128xf32>
    %66 = arith.addf %63, %65 : vector<8x128xf32>
    %cst_60 = arith.constant 0.000000e+00 : f32
    %67 = vector.broadcast %cst_60 : f32 to vector<8x128xf32>
    %68 = arith.maximumf %66, %67 : vector<8x128xf32>
    %c0_61 = arith.constant 0 : index
    %c768_62 = arith.constant 768 : index
    %69 = vector.load %arg4[%c0_61, %c768_62] : memref<8x1024xf32, #tpu.memory_space<vmem>>, vector<8x128xf32>
    tpu.vector_store %arg4[%c0_61, %c768_62], %68 {strides = array<i32>} : memref<8x1024xf32, #tpu.memory_space<vmem>>, vector<8x128xf32>,
    %c0_63 = arith.constant 0 : index
    %c896 = arith.constant 896 : index
    %70 = vector.load %arg1[%c0_63, %c896] : memref<8x1024xbf16, #tpu.memory_space<vmem>>, vector<8x128xbf16>
    %c7 = arith.constant 7 : index
    %c0_64 = arith.constant 0 : index
    %c0_65 = arith.constant 0 : index
    %71 = vector.load %arg2[%c7, %c0_64, %c0_65] : memref<8x128x128xbf16, #tpu.memory_space<vmem>>, vector<1x128x128xbf16>
    %72 = vector.shape_cast %71 : vector<1x128x128xbf16> to vector<128x128xbf16>
    %cst_66 = arith.constant dense<0.000000e+00> : vector<8x128xf32>
    %73 = tpu.matmul %70, %72, %cst_66 {dimension_numbers = #tpu.dot_dimension_numbers<[1], [0], [0], [1], [0, 0, 1, 1], [], []>} : vector<8x128xbf16>, vector<128x128xbf16>, vector<8x128xf32> -> vector<8x128xf32>
    %c0_67 = arith.constant 0 : index
    %c896_68 = arith.constant 896 : index
    %74 = vector.load %arg3[%c0_67, %c896_68] : memref<1x1024xf32, #tpu.memory_space<vmem>>, vector<1x128xf32>
    %75 = vector.broadcast %74 : vector<1x128xf32> to vector<8x128xf32>
    %76 = arith.addf %73, %75 : vector<8x128xf32>
    %cst_69 = arith.constant 0.000000e+00 : f32
    %77 = vector.broadcast %cst_69 : f32 to vector<8x128xf32>
    %78 = arith.maximumf %76, %77 : vector<8x128xf32>
    %c0_70 = arith.constant 0 : index
    %c896_71 = arith.constant 896 : index
    %79 = vector.load %arg4[%c0_70, %c896_71] : memref<8x1024xf32, #tpu.memory_space<vmem>>, vector<8x128xf32>
    tpu.vector_store %arg4[%c0_70, %c896_71], %78 {strides = array<i32>} : memref<8x1024xf32, #tpu.memory_space<vmem>>, vector<8x128xf32>,
    return
  }
  func.func @transform_0(%arg0: i32) -> (i32, i32) {
    %c0_i32 = arith.constant 0 : i32
    %c0_i32_0 = arith.constant 0 : i32
    return %arg0, %c0_i32 : i32, i32
  }
  func.func @transform_1(%arg0: i32) -> (i32, i32, i32) {
    %c0_i32 = arith.constant 0 : i32
    %c0_i32_0 = arith.constant 0 : i32
    %c0_i32_1 = arith.constant 0 : i32
    %c0_i32_2 = arith.constant 0 : i32
    return %c0_i32, %c0_i32_0, %c0_i32_1 : i32, i32, i32
  }
  func.func @transform_2(%arg0: i32) -> (i32, i32) {
    %c0_i32 = arith.constant 0 : i32
    %c0_i32_0 = arith.constant 0 : i32
    %c0_i32_1 = arith.constant 0 : i32
    return %c0_i32, %c0_i32_0 : i32, i32
  }
  func.func @transform_3(%arg0: i32) -> (i32, i32) {
    %c0_i32 = arith.constant 0 : i32
    %c0_i32_0 = arith.constant 0 : i32
    return %arg0, %c0_i32 : i32, i32
  }
}

</mosaic_0001>

<llo_original>
// kernel: tpu_custom_call.1
$region0: #{tpu_custom_call.1}
  #allocation0 [shape = 'u32[]', space=smem, size = 0x4, offset = 0x4, fixed_abs, tag = 'smem constant byte address 0x4 - core index']
  #allocation1 [shape = 'u32[144,128]{1,0:T(1,128)}', space=vmem, size = 0x12000, scoped, tag = 'internal scratch']
  %s0 = inlined_call_operand.hbm [shape: bf16[8,1024], index: 0, kind: input, shape index: {}]
  %s1 = inlined_call_operand.hbm [shape: bf16[8,128,128], index: 1, kind: input, shape index: {}]
  %s2 = inlined_call_operand.hbm [shape: f32[1,1024], index: 2, kind: input, shape index: {}]
  %s3 = inlined_call_operand.hbm [shape: f32[8,1024], index: 3, kind: output, shape index: {}]
  %s4 = sld [smem:[#allocation0]]
  $region34: #{tpu_custom_call.1} parent=0
    _
  %s6 = ssub.s32 1, %s4
  %s7 = scalar_select 0, %s6, %s4
  $region1: #{tpu_custom_call.1} parent=0
    #allocation2 [shape = 'u8[16384]{0}', space=vmem, size = 0x4000, scoped, tag = 'input window, operand 0, single buffered']
    #allocation3 [shape = 's32[1]{0}', space=sflag, size = 0x4, scoped, tag = 'scoped memory for tpu_custom_call.1']
    #allocation4 [shape = 's32[1]{0}', space=sflag, size = 0x4, scoped, tag = 'scoped memory for tpu_custom_call.1']
    #allocation5 [shape = 'u8[262144]{0}', space=vmem, size = 0x40000, scoped, tag = 'input window, operand 1, single buffered']
    #allocation6 [shape = 's32[1]{0}', space=sflag, size = 0x4, scoped, tag = 'scoped memory for tpu_custom_call.1']
    #allocation7 [shape = 'u8[4096]{0}', space=vmem, size = 0x1000, scoped, tag = 'input window, operand 2, single buffered']
    #allocation8 [shape = 'u8[32768]{0}', space=vmem, size = 0x8000, scoped, tag = 'output window, operand 0, single buffered']
    %8 = vsyncpa [#allocation3], 0
    %9 = vsyncpa [#allocation6], 0
    %10 = vsyncpa [#allocation4], 0
    // Predicated region
    $region2: #{tpu_custom_call.1} parent=1 // pred_check
      _
    $region3: #{tpu_custom_call.1} parent=1 // pred_check_branch
      %12 = sbr.rel (0) target = $region5
    $region4: #{tpu_custom_call.1} parent=1 // pred_region
      %s14 = ssub.s32 512, 512
      %15 = vsyncadd [#allocation3], %s14
      %s17 = sshll.u32 [#allocation2], 4
      %s18 = int_to_ptr.vmem [resolvable:$true] %s17
      %20 = dma.hbm_to_vmem [thread:$0]  %s0, 512, %s18, [#allocation3]
    $region5: #{tpu_custom_call.1} parent=1 // pred_fallthru
      _
    // Predicated region
    $region6: #{tpu_custom_call.1} parent=1 // pred_check
      _
    $region7: #{tpu_custom_call.1} parent=1 // pred_check_branch
      %22 = sbr.rel (0) target = $region9
    $region8: #{tpu_custom_call.1} parent=1 // pred_region
      %s24 = ssub.s32 8192, 8192
      %25 = vsyncadd [#allocation6], %s24
      %s26 = sshll.u32 [#allocation5], 4
      %s27 = int_to_ptr.vmem [resolvable:$true] %s26
      %32 = dma.hbm_to_vmem [thread:$0]  %s1, 8192, %s27, [#allocation6], 64, 64, 4
    $region9: #{tpu_custom_call.1} parent=1 // pred_fallthru
      _
    // Predicated region
    $region10: #{tpu_custom_call.1} parent=1 // pred_check
      _
    $region11: #{tpu_custom_call.1} parent=1 // pred_check_branch
      %34 = sbr.rel (0) target = $region13
    $region12: #{tpu_custom_call.1} parent=1 // pred_region
      %s36 = ssub.s32 128, 128
      %37 = vsyncadd [#allocation6], %s36
      %s39 = sshll.u32 [#allocation7], 4
      %s40 = int_to_ptr.vmem [resolvable:$true] %s39
      %42 = dma.hbm_to_vmem [thread:$0]  %s2, 128, %s40, [#allocation6]
    $region13: #{tpu_custom_call.1} parent=1 // pred_fallthru
      _
    // Predicated region
    $region14: #{tpu_custom_call.1} parent=1 // pred_check
      _
    $region15: #{tpu_custom_call.1} parent=1 // pred_check_branch
      %44 = sbr.rel (0) target = $region17
    $region16: #{tpu_custom_call.1} parent=1 // pred_region
      %45 = dma.done [#allocation3], 512
    $region17: #{tpu_custom_call.1} parent=1 // pred_fallthru
      _
    // Predicated region
    $region18: #{tpu_custom_call.1} parent=1 // pred_check
      _
    $region19: #{tpu_custom_call.1} parent=1 // pred_check_branch
      %47 = sbr.rel (0) target = $region21
    $region20: #{tpu_custom_call.1} parent=1 // pred_region
      %48 = dma.done [#allocation6], 8192
    $region21: #{tpu_custom_call.1} parent=1 // pred_fallthru
      _
    // Predicated region
    $region22: #{tpu_custom_call.1} parent=1 // pred_check
      _
    $region23: #{tpu_custom_call.1} parent=1 // pred_check_branch
      %50 = sbr.rel (0) target = $region25
    $region24: #{tpu_custom_call.1} parent=1 // pred_region
      %51 = dma.done [#allocation6], 128
    $region25: #{tpu_custom_call.1} parent=1 // pred_fallthru
      _
    %v53 = vld [vmem:[#allocation2] sm:$0xf]
    %v54 = vld [vmem:[#allocation5] sm:$0xf]
    %v55 = vld [vmem:[#allocation5 + $0x4] sm:$0xf]
    %v56 = vld [vmem:[#allocation5 + $0x8] sm:$0xf]
    %v57 = vld [vmem:[#allocation5 + $0xc] sm:$0xf]
    %v58 = vld [vmem:[#allocation5 + $0x10] sm:$0xf]
    %v59 = vld [vmem:[#allocation5 + $0x14] sm:$0xf]
    %v60 = vld [vmem:[#allocation5 + $0x18] sm:$0xf]
    %v61 = vld [vmem:[#allocation5 + $0x1c] sm:$0xf]
    %v62 = vld [vmem:[#allocation5 + $0x20] sm:$0xf]
    %v63 = vld [vmem:[#allocation5 + $0x24] sm:$0xf]
    %v64 = vld [vmem:[#allocation5 + $0x28] sm:$0xf]
    %v65 = vld [vmem:[#allocation5 + $0x2c] sm:$0xf]
    %v66 = vld [vmem:[#allocation5 + $0x30] sm:$0xf]
    %v67 = vld [vmem:[#allocation5 + $0x34] sm:$0xf]
    %v68 = vld [vmem:[#allocation5 + $0x38] sm:$0xf]
    %v69 = vld [vmem:[#allocation5 + $0x3c] sm:$0xf]
    %v70 = vld [vmem:[#allocation7] sm:$0x1]
    %v72 = vlaneseq
    %v73 = vshrl.u32 %v72, 7
    %v74 = vsub.s32 0, %v73
    %v75 = vrot.slane %v70, %v74
    %v93 = vunpack.c.l.b16 %v54
    %v94 = vunpack.c.l.b16 %v55
    %v95 = vunpack.c.l.b16 %v56
    %v96 = vunpack.c.l.b16 %v57
    %v97 = vunpack.c.l.b16 %v58
    %v98 = vunpack.c.l.b16 %v59
    %v99 = vunpack.c.l.b16 %v60
    %v100 = vunpack.c.l.b16 %v61
    %v101 = vunpack.c.l.b16 %v62
    %v102 = vunpack.c.l.b16 %v63
    %v103 = vunpack.c.l.b16 %v64
    %v104 = vunpack.c.l.b16 %v65
    %v105 = vunpack.c.l.b16 %v66
    %v106 = vunpack.c.l.b16 %v67
    %v107 = vunpack.c.l.b16 %v68
    %v108 = vunpack.c.l.b16 %v69
    %v109 = vpack.c.b16 %v94, %v93
    %v110 = vpack.c.b16 %v96, %v95
    %v111 = vpack.c.b16 %v98, %v97
    %v112 = vpack.c.b16 %v100, %v99
    %v113 = vpack.c.b16 %v102, %v101
    %v114 = vpack.c.b16 %v104, %v103
    %v115 = vpack.c.b16 %v106, %v105
    %v116 = vpack.c.b16 %v108, %v107
    %125 = vmatprep.subr.bf16.mxu0 0
    %126 = vmatpush1.bf16.msra.mxu0 %v116
    %127 = vmatprep.subr.bf16.mxu0 0
    %128 = vmatpush1.bf16.msra.mxu0 %v115
    %129 = vmatprep.subr.bf16.mxu0 0
    %130 = vmatpush1.bf16.msra.mxu0 %v114
    %131 = vmatprep.subr.bf16.mxu0 0
    %132 = vmatpush1.bf16.msra.mxu0 %v113
    %133 = vmatprep.subr.bf16.mxu0 0
    %134 = vmatpush1.bf16.msra.mxu0 %v112
    %135 = vmatprep.subr.bf16.mxu0 0
    %136 = vmatpush1.bf16.msra.mxu0 %v111
    %137 = vmatprep.subr.bf16.mxu0 0
    %138 = vmatpush1.bf16.msra.mxu0 %v110
    %139 = vmatprep.subr.bf16.mxu0 0
    %140 = vmatpush1.bf16.msra.mxu0 %v109
    %141 = vmatprep.subr.bf16.mxu0 0
    %142 = vmatpush2.bf16.msra.mxu0 0
    %143 = vmatprep.subr.bf16.mxu0 0
    %144 = vmatpush2.bf16.msra.mxu0 0
    %145 = vmatprep.subr.bf16.mxu0 0
    %146 = vmatpush2.bf16.msra.mxu0 0
    %147 = vmatprep.subr.bf16.mxu0 0
    %148 = vmatpush2.bf16.msra.mxu0 0
    %149 = vmatprep.subr.bf16.mxu0 0
    %150 = vmatpush2.bf16.msra.mxu0 0
    %151 = vmatprep.subr.bf16.mxu0 0
    %152 = vmatpush2.bf16.msra.mxu0 0
    %153 = vmatprep.subr.bf16.mxu0 0
    %154 = vmatpush2.bf16.msra.mxu0 0
    %155 = vmatprep.subr.bf16.mxu0 0
    %156 = vmatpush2.bf16.msra.mxu0 0
    %157 = vmatprep.mubr.bf16.mxu0 0
    %158 = vmatmul.mubr.bf16.gmra.mxu0 %v53
    %v159 = vpop.f32.mrf.mxu0
    %v160 = vadd.f32 %v75, %v159
    %v161 = vpop.f32.mrf.mxu0
    %v162 = vpop.f32.mrf.mxu0
    %v163 = vpop.f32.mrf.mxu0
    %164 = vdwg.mxu0
    %v165 = vmax.f32 %v160, 0.0
    %166 = vst [vmem:[#allocation8] sm:$0xff] %v165
    %v167 = vld [vmem:[#allocation2 + $0x4] sm:$0xf]
    %s168 = scalar_lea.vmem [#allocation5], 64
    %v169 = vld [vmem:[%s168] sm:$0xf]
    %v170 = vld [vmem:[%s168 + $0x4] sm:$0xf]
    %v171 = vld [vmem:[%s168 + $0x8] sm:$0xf]
    %v172 = vld [vmem:[%s168 + $0xc] sm:$0xf]
    %v173 = vld [vmem:[%s168 + $0x10] sm:$0xf]
    %v174 = vld [vmem:[%s168 + $0x14] sm:$0xf]
    %v175 = vld [vmem:[%s168 + $0x18] sm:$0xf]
    %v176 = vld [vmem:[%s168 + $0x1c] sm:$0xf]
    %v177 = vld [vmem:[%s168 + $0x20] sm:$0xf]
    %v178 = vld [vmem:[%s168 + $0x24] sm:$0xf]
    %v179 = vld [vmem:[%s168 + $0x28] sm:$0xf]
    %v180 = vld [vmem:[%s168 + $0x2c] sm:$0xf]
    %v181 = vld [vmem:[%s168 + $0x30] sm:$0xf]
    %v182 = vld [vmem:[%s168 + $0x34] sm:$0xf]
    %v183 = vld [vmem:[%s168 + $0x38] sm:$0xf]
    %v184 = vld [vmem:[%s168 + $0x3c] sm:$0xf]
    %v185 = vld [vmem:[#allocation7 + $0x1] sm:$0x1]
    %v187 = vlaneseq
    %v188 = vshrl.u32 %v187, 7
    %v189 = vsub.s32 0, %v188
    %v190 = vrot.slane %v185, %v189
    %v208 = vunpack.c.l.b16 %v169
    %v209 = vunpack.c.l.b16 %v170
    %v210 = vunpack.c.l.b16 %v171
    %v211 = vunpack.c.l.b16 %v172
    %v212 = vunpack.c.l.b16 %v173
    %v213 = vunpack.c.l.b16 %v174
    %v214 = vunpack.c.l.b16 %v175
    %v215 = vunpack.c.l.b16 %v176
    %v216 = vunpack.c.l.b16 %v177
    %v217 = vunpack.c.l.b16 %v178
    %v218 = vunpack.c.l.b16 %v179
    %v219 = vunpack.c.l.b16 %v180
    %v220 = vunpack.c.l.b16 %v181
    %v221 = vunpack.c.l.b16 %v182
    %v222 = vunpack.c.l.b16 %v183
    %v223 = vunpack.c.l.b16 %v184
    %v224 = vpack.c.b16 %v209, %v208
    %v225 = vpack.c.b16 %v211, %v210
    %v226 = vpack.c.b16 %v213, %v212
    %v227 = vpack.c.b16 %v215, %v214
    %v228 = vpack.c.b16 %v217, %v216
    %v229 = vpack.c.b16 %v219, %v218
    %v230 = vpack.c.b16 %v221, %v220
    %v231 = vpack.c.b16 %v223, %v222
    %240 = vmatprep.subr.bf16.mxu0 0
    %241 = vmatpush1.bf16.msra.mxu0 %v231
    %242 = vmatprep.subr.bf16.mxu0 0
    %243 = vmatpush1.bf16.msra.mxu0 %v230
    %244 = vmatprep.subr.bf16.mxu0 0
    %245 = vmatpush1.bf16.msra.mxu0 %v229
    %246 = vmatprep.subr.bf16.mxu0 0
    %247 = vmatpush1.bf16.msra.mxu0 %v228
    %248 = vmatprep.subr.bf16.mxu0 0
    %249 = vmatpush1.bf16.msra.mxu0 %v227
    %250 = vmatprep.subr.bf16.mxu0 0
    %251 = vmatpush1.bf16.msra.mxu0 %v226
    %252 = vmatprep.subr.bf16.mxu0 0
    %253 = vmatpush1.bf16.msra.mxu0 %v225
    %254 = vmatprep.subr.bf16.mxu0 0
    %255 = vmatpush1.bf16.msra.mxu0 %v224
    %256 = vmatprep.subr.bf16.mxu0 0
    %257 = vmatpush2.bf16.msra.mxu0 0
    %258 = vmatprep.subr.bf16.mxu0 0
    %259 = vmatpush2.bf16.msra.mxu0 0
    %260 = vmatprep.subr.bf16.mxu0 0
    %261 = vmatpush2.bf16.msra.mxu0 0
    %262 = vmatprep.subr.bf16.mxu0 0
    %263 = vmatpush2.bf16.msra.mxu0 0
    %264 = vmatprep.subr.bf16.mxu0 0
    %265 = vmatpush2.bf16.msra.mxu0 0
    %266 = vmatprep.subr.bf16.mxu0 0
    %267 = vmatpush2.bf16.msra.mxu0 0
    %268 = vmatprep.subr.bf16.mxu0 0
    %269 = vmatpush2.bf16.msra.mxu0 0
    %270 = vmatprep.subr.bf16.mxu0 0
    %271 = vmatpush2.bf16.msra.mxu0 0
    %272 = vmatprep.mubr.bf16.mxu0 0
    %273 = vmatmul.mubr.bf16.gmra.mxu0 %v167
    %v274 = vpop.f32.mrf.mxu0
    %v275 = vadd.f32 %v190, %v274
    %v276 = vpop.f32.mrf.mxu0
    %v277 = vpop.f32.mrf.mxu0
    %v278 = vpop.f32.mrf.mxu0
    %279 = vdwg.mxu0
    %v280 = vmax.f32 %v275, 0.0
    %281 = vst [vmem:[#allocation8 + $0x8] sm:$0xff] %v280
    %v282 = vld [vmem:[#allocation2 + $0x8] sm:$0xf]
    %s283 = scalar_lea.vmem [#allocation5], 128
    %v284 = vld [vmem:[%s283] sm:$0xf]
    %v285 = vld [vmem:[%s283 + $0x4] sm:$0xf]
    %v286 = vld [vmem:[%s283 + $0x8] sm:$0xf]
    %v287 = vld [vmem:[%s283 + $0xc] sm:$0xf]
    %v288 = vld [vmem:[%s283 + $0x10] sm:$0xf]
    %v289 = vld [vmem:[%s283 + $0x14] sm:$0xf]
    %v290 = vld [vmem:[%s283 + $0x18] sm:$0xf]
    %v291 = vld [vmem:[%s283 + $0x1c] sm:$0xf]
    %v292 = vld [vmem:[%s283 + $0x20] sm:$0xf]
    %v293 = vld [vmem:[%s283 + $0x24] sm:$0xf]
    %v294 = vld [vmem:[%s283 + $0x28] sm:$0xf]
    %v295 = vld [vmem:[%s283 + $0x2c] sm:$0xf]
    %v296 = vld [vmem:[%s283 + $0x30] sm:$0xf]
    %v297 = vld [vmem:[%s283 + $0x34] sm:$0xf]
    %v298 = vld [vmem:[%s283 + $0x38] sm:$0xf]
    %v299 = vld [vmem:[%s283 + $0x3c] sm:$0xf]
    %v300 = vld [vmem:[#allocation7 + $0x2] sm:$0x1]
    %v302 = vlaneseq
    %v303 = vshrl.u32 %v302, 7
    %v304 = vsub.s32 0, %v303
    %v305 = vrot.slane %v300, %v304
    %v323 = vunpack.c.l.b16 %v284
    %v324 = vunpack.c.l.b16 %v285
    %v325 = vunpack.c.l.b16 %v286
    %v326 = vunpack.c.l.b16 %v287
    %v327 = vunpack.c.l.b16 %v288
    %v328 = vunpack.c.l.b16 %v289
    %v329 = vunpack.c.l.b16 %v290
    %v330 = vunpack.c.l.b16 %v291
    %v331 = vunpack.c.l.b16 %v292
    %v332 = vunpack.c.l.b16 %v293
    %v333 = vunpack.c.l.b16 %v294
    %v334 = vunpack.c.l.b16 %v295
    %v335 = vunpack.c.l.b16 %v296
    %v336 = vunpack.c.l.b16 %v297
    %v337 = vunpack.c.l.b16 %v298
    %v338 = vunpack.c.l.b16 %v299
    %v339 = vpack.c.b16 %v324, %v323
    %v340 = vpack.c.b16 %v326, %v325
    %v341 = vpack.c.b16 %v328, %v327
    %v342 = vpack.c.b16 %v330, %v329
    %v343 = vpack.c.b16 %v332, %v331
    %v344 = vpack.c.b16 %v334, %v333
    %v345 = vpack.c.b16 %v336, %v335
    %v346 = vpack.c.b16 %v338, %v337
    %355 = vmatprep.subr.bf16.mxu0 0
    %356 = vmatpush1.bf16.msra.mxu0 %v346
    %357 = vmatprep.subr.bf16.mxu0 0
    %358 = vmatpush1.bf16.msra.mxu0 %v345
    %359 = vmatprep.subr.bf16.mxu0 0
    %360 = vmatpush1.bf16.msra.mxu0 %v344
    %361 = vmatprep.subr.bf16.mxu0 0
    %362 = vmatpush1.bf16.msra.mxu0 %v343
    %363 = vmatprep.subr.bf16.mxu0 0
    %364 = vmatpush1.bf16.msra.mxu0 %v342
    %365 = vmatprep.subr.bf16.mxu0 0
    %366 = vmatpush1.bf16.msra.mxu0 %v341
    %367 = vmatprep.subr.bf16.mxu0 0
    %368 = vmatpush1.bf16.msra.mxu0 %v340
    %369 = vmatprep.subr.bf16.mxu0 0
    %370 = vmatpush1.bf16.msra.mxu0 %v339
    %371 = vmatprep.subr.bf16.mxu0 0
    %372 = vmatpush2.bf16.msra.mxu0 0
    %373 = vmatprep.subr.bf16.mxu0 0
    %374 = vmatpush2.bf16.msra.mxu0 0
    %375 = vmatprep.subr.bf16.mxu0 0
    %376 = vmatpush2.bf16.msra.mxu0 0
    %377 = vmatprep.subr.bf16.mxu0 0
    %378 = vmatpush2.bf16.msra.mxu0 0
    %379 = vmatprep.subr.bf16.mxu0 0
    %380 = vmatpush2.bf16.msra.mxu0 0
    %381 = vmatprep.subr.bf16.mxu0 0
    %382 = vmatpush2.bf16.msra.mxu0 0
    %383 = vmatprep.subr.bf16.mxu0 0
    %384 = vmatpush2.bf16.msra.mxu0 0
    %385 = vmatprep.subr.bf16.mxu0 0
    %386 = vmatpush2.bf16.msra.mxu0 0
    %387 = vmatprep.mubr.bf16.mxu0 0
    %388 = vmatmul.mubr.bf16.gmra.mxu0 %v282
    %v389 = vpop.f32.mrf.mxu0
    %v390 = vadd.f32 %v305, %v389
    %v391 = vpop.f32.mrf.mxu0
    %v392 = vpop.f32.mrf.mxu0
    %v393 = vpop.f32.mrf.mxu0
    %394 = vdwg.mxu0
    %v395 = vmax.f32 %v390, 0.0
    %396 = vst [vmem:[#allocation8 + $0x10] sm:$0xff] %v395
    %v397 = vld [vmem:[#allocation2 + $0xc] sm:$0xf]
    %s398 = scalar_lea.vmem [#allocation5], 192
    %v399 = vld [vmem:[%s398] sm:$0xf]
    %v400 = vld [vmem:[%s398 + $0x4] sm:$0xf]
    %v401 = vld [vmem:[%s398 + $0x8] sm:$0xf]
    %v402 = vld [vmem:[%s398 + $0xc] sm:$0xf]
    %v403 = vld [vmem:[%s398 + $0x10] sm:$0xf]
    %v404 = vld [vmem:[%s398 + $0x14] sm:$0xf]
    %v405 = vld [vmem:[%s398 + $0x18] sm:$0xf]
    %v406 = vld [vmem:[%s398 + $0x1c] sm:$0xf]
    %v407 = vld [vmem:[%s398 + $0x20] sm:$0xf]
    %v408 = vld [vmem:[%s398 + $0x24] sm:$0xf]
    %v409 = vld [vmem:[%s398 + $0x28] sm:$0xf]
    %v410 = vld [vmem:[%s398 + $0x2c] sm:$0xf]
    %v411 = vld [vmem:[%s398 + $0x30] sm:$0xf]
    %v412 = vld [vmem:[%s398 + $0x34] sm:$0xf]
    %v413 = vld [vmem:[%s398 + $0x38] sm:$0xf]
    %v414 = vld [vmem:[%s398 + $0x3c] sm:$0xf]
    %v415 = vld [vmem:[#allocation7 + $0x3] sm:$0x1]
    %v417 = vlaneseq
    %v418 = vshrl.u32 %v417, 7
    %v419 = vsub.s32 0, %v418
    %v420 = vrot.slane %v415, %v419
    %v438 = vunpack.c.l.b16 %v399
    %v439 = vunpack.c.l.b16 %v400
    %v440 = vunpack.c.l.b16 %v401
    %v441 = vunpack.c.l.b16 %v402
    %v442 = vunpack.c.l.b16 %v403
    %v443 = vunpack.c.l.b16 %v404
    %v444 = vunpack.c.l.b16 %v405
    %v445 = vunpack.c.l.b16 %v406
    %v446 = vunpack.c.l.b16 %v407
    %v447 = vunpack.c.l.b16 %v408
    %v448 = vunpack.c.l.b16 %v409
    %v449 = vunpack.c.l.b16 %v410
    %v450 = vunpack.c.l.b16 %v411
    %v451 = vunpack.c.l.b16 %v412
    %v452 = vunpack.c.l.b16 %v413
    %v453 = vunpack.c.l.b16 %v414
    %v454 = vpack.c.b16 %v439, %v438
    %v455 = vpack.c.b16 %v441, %v440
    %v456 = vpack.c.b16 %v443, %v442
    %v457 = vpack.c.b16 %v445, %v444
    %v458 = vpack.c.b16 %v447, %v446
    %v459 = vpack.c.b16 %v449, %v448
    %v460 = vpack.c.b16 %v451, %v450
    %v461 = vpack.c.b16 %v453, %v452
    %470 = vmatprep.subr.bf16.mxu0 0
    %471 = vmatpush1.bf16.msra.mxu0 %v461
    %472 = vmatprep.subr.bf16.mxu0 0
    %473 = vmatpush1.bf16.msra.mxu0 %v460
    %474 = vmatprep.subr.bf16.mxu0 0
    %475 = vmatpush1.bf16.msra.mxu0 %v459
    %476 = vmatprep.subr.bf16.mxu0 0
    %477 = vmatpush1.bf16.msra.mxu0 %v458
    %478 = vmatprep.subr.bf16.mxu0 0
    %479 = vmatpush1.bf16.msra.mxu0 %v457
    %480 = vmatprep.subr.bf16.mxu0 0
    %481 = vmatpush1.bf16.msra.mxu0 %v456
    %482 = vmatprep.subr.bf16.mxu0 0
    %483 = vmatpush1.bf16.msra.mxu0 %v455
    %484 = vmatprep.subr.bf16.mxu0 0
    %485 = vmatpush1.bf16.msra.mxu0 %v454
    %486 = vmatprep.subr.bf16.mxu0 0
    %487 = vmatpush2.bf16.msra.mxu0 0
    %488 = vmatprep.subr.bf16.mxu0 0
    %489 = vmatpush2.bf16.msra.mxu0 0
    %490 = vmatprep.subr.bf16.mxu0 0
    %491 = vmatpush2.bf16.msra.mxu0 0
    %492 = vmatprep.subr.bf16.mxu0 0
    %493 = vmatpush2.bf16.msra.mxu0 0
    %494 = vmatprep.subr.bf16.mxu0 0
    %495 = vmatpush2.bf16.msra.mxu0 0
    %496 = vmatprep.subr.bf16.mxu0 0
    %497 = vmatpush2.bf16.msra.mxu0 0
    %498 = vmatprep.subr.bf16.mxu0 0
    %499 = vmatpush2.bf16.msra.mxu0 0
    %500 = vmatprep.subr.bf16.mxu0 0
    %501 = vmatpush2.bf16.msra.mxu0 0
    %502 = vmatprep.mubr.bf16.mxu0 0
    %503 = vmatmul.mubr.bf16.gmra.mxu0 %v397
    %v504 = vpop.f32.mrf.mxu0
    %v505 = vadd.f32 %v420, %v504
    %v506 = vpop.f32.mrf.mxu0
    %v507 = vpop.f32.mrf.mxu0
    %v508 = vpop.f32.mrf.mxu0
    %509 = vdwg.mxu0
    %v510 = vmax.f32 %v505, 0.0
    %511 = vst [vmem:[#allocation8 + $0x18] sm:$0xff] %v510
    %v512 = vld [vmem:[#allocation2 + $0x10] sm:$0xf]
    %s513 = scalar_lea.vmem [#allocation5], 256
    %v514 = vld [vmem:[%s513] sm:$0xf]
    %v515 = vld [vmem:[%s513 + $0x4] sm:$0xf]
    %v516 = vld [vmem:[%s513 + $0x8] sm:$0xf]
    %v517 = vld [vmem:[%s513 + $0xc] sm:$0xf]
    %v518 = vld [vmem:[%s513 + $0x10] sm:$0xf]
    %v519 = vld [vmem:[%s513 + $0x14] sm:$0xf]
    %v520 = vld [vmem:[%s513 + $0x18] sm:$0xf]
    %v521 = vld [vmem:[%s513 + $0x1c] sm:$0xf]
    %v522 = vld [vmem:[%s513 + $0x20] sm:$0xf]
    %v523 = vld [vmem:[%s513 + $0x24] sm:$0xf]
    %v524 = vld [vmem:[%s513 + $0x28] sm:$0xf]
    %v525 = vld [vmem:[%s513 + $0x2c] sm:$0xf]
    %v526 = vld [vmem:[%s513 + $0x30] sm:$0xf]
    %v527 = vld [vmem:[%s513 + $0x34] sm:$0xf]
    %v528 = vld [vmem:[%s513 + $0x38] sm:$0xf]
    %v529 = vld [vmem:[%s513 + $0x3c] sm:$0xf]
    %v530 = vld [vmem:[#allocation7 + $0x4] sm:$0x1]
    %v532 = vlaneseq
    %v533 = vshrl.u32 %v532, 7
    %v534 = vsub.s32 0, %v533
    %v535 = vrot.slane %v530, %v534
    %v553 = vunpack.c.l.b16 %v514
    %v554 = vunpack.c.l.b16 %v515
    %v555 = vunpack.c.l.b16 %v516
    %v556 = vunpack.c.l.b16 %v517
    %v557 = vunpack.c.l.b16 %v518
    %v558 = vunpack.c.l.b16 %v519
    %v559 = vunpack.c.l.b16 %v520
    %v560 = vunpack.c.l.b16 %v521
    %v561 = vunpack.c.l.b16 %v522
    %v562 = vunpack.c.l.b16 %v523
    %v563 = vunpack.c.l.b16 %v524
    %v564 = vunpack.c.l.b16 %v525
    %v565 = vunpack.c.l.b16 %v526
    %v566 = vunpack.c.l.b16 %v527
    %v567 = vunpack.c.l.b16 %v528
    %v568 = vunpack.c.l.b16 %v529
    %v569 = vpack.c.b16 %v554, %v553
    %v570 = vpack.c.b16 %v556, %v555
    %v571 = vpack.c.b16 %v558, %v557
    %v572 = vpack.c.b16 %v560, %v559
    %v573 = vpack.c.b16 %v562, %v561
    %v574 = vpack.c.b16 %v564, %v563
    %v575 = vpack.c.b16 %v566, %v565
    %v576 = vpack.c.b16 %v568, %v567
    %585 = vmatprep.subr.bf16.mxu0 0
    %586 = vmatpush1.bf16.msra.mxu0 %v576
    %587 = vmatprep.subr.bf16.mxu0 0
    %588 = vmatpush1.bf16.msra.mxu0 %v575
    %589 = vmatprep.subr.bf16.mxu0 0
    %590 = vmatpush1.bf16.msra.mxu0 %v574
    %591 = vmatprep.subr.bf16.mxu0 0
    %592 = vmatpush1.bf16.msra.mxu0 %v573
    %593 = vmatprep.subr.bf16.mxu0 0
    %594 = vmatpush1.bf16.msra.mxu0 %v572
    %595 = vmatprep.subr.bf16.mxu0 0
    %596 = vmatpush1.bf16.msra.mxu0 %v571
    %597 = vmatprep.subr.bf16.mxu0 0
    %598 = vmatpush1.bf16.msra.mxu0 %v570
    %599 = vmatprep.subr.bf16.mxu0 0
    %600 = vmatpush1.bf16.msra.mxu0 %v569
    %601 = vmatprep.subr.bf16.mxu0 0
    %602 = vmatpush2.bf16.msra.mxu0 0
    %603 = vmatprep.subr.bf16.mxu0 0
    %604 = vmatpush2.bf16.msra.mxu0 0
    %605 = vmatprep.subr.bf16.mxu0 0
    %606 = vmatpush2.bf16.msra.mxu0 0
    %607 = vmatprep.subr.bf16.mxu0 0
    %608 = vmatpush2.bf16.msra.mxu0 0
    %609 = vmatprep.subr.bf16.mxu0 0
    %610 = vmatpush2.bf16.msra.mxu0 0
    %611 = vmatprep.subr.bf16.mxu0 0
    %612 = vmatpush2.bf16.msra.mxu0 0
    %613 = vmatprep.subr.bf16.mxu0 0
    %614 = vmatpush2.bf16.msra.mxu0 0
    %615 = vmatprep.subr.bf16.mxu0 0
    %616 = vmatpush2.bf16.msra.mxu0 0
    %617 = vmatprep.mubr.bf16.mxu0 0
    %618 = vmatmul.mubr.bf16.gmra.mxu0 %v512
    %v619 = vpop.f32.mrf.mxu0
    %v620 = vadd.f32 %v535, %v619
    %v621 = vpop.f32.mrf.mxu0
    %v622 = vpop.f32.mrf.mxu0
    %v623 = vpop.f32.mrf.mxu0
    %624 = vdwg.mxu0
    %v625 = vmax.f32 %v620, 0.0
    %626 = vst [vmem:[#allocation8 + $0x20] sm:$0xff] %v625
    %v627 = vld [vmem:[#allocation2 + $0x14] sm:$0xf]
    %s628 = scalar_lea.vmem [#allocation5], 320
    %v629 = vld [vmem:[%s628] sm:$0xf]
    %v630 = vld [vmem:[%s628 + $0x4] sm:$0xf]
    %v631 = vld [vmem:[%s628 + $0x8] sm:$0xf]
    %v632 = vld [vmem:[%s628 + $0xc] sm:$0xf]
    %v633 = vld [vmem:[%s628 + $0x10] sm:$0xf]
    %v634 = vld [vmem:[%s628 + $0x14] sm:$0xf]
    %v635 = vld [vmem:[%s628 + $0x18] sm:$0xf]
    %v636 = vld [vmem:[%s628 + $0x1c] sm:$0xf]
    %v637 = vld [vmem:[%s628 + $0x20] sm:$0xf]
    %v638 = vld [vmem:[%s628 + $0x24] sm:$0xf]
    %v639 = vld [vmem:[%s628 + $0x28] sm:$0xf]
    %v640 = vld [vmem:[%s628 + $0x2c] sm:$0xf]
    %v641 = vld [vmem:[%s628 + $0x30] sm:$0xf]
    %v642 = vld [vmem:[%s628 + $0x34] sm:$0xf]
    %v643 = vld [vmem:[%s628 + $0x38] sm:$0xf]
    %v644 = vld [vmem:[%s628 + $0x3c] sm:$0xf]
    %v645 = vld [vmem:[#allocation7 + $0x5] sm:$0x1]
    %v647 = vlaneseq
    %v648 = vshrl.u32 %v647, 7
    %v649 = vsub.s32 0, %v648
    %v650 = vrot.slane %v645, %v649
    %v668 = vunpack.c.l.b16 %v629
    %v669 = vunpack.c.l.b16 %v630
    %v670 = vunpack.c.l.b16 %v631
    %v671 = vunpack.c.l.b16 %v632
    %v672 = vunpack.c.l.b16 %v633
    %v673 = vunpack.c.l.b16 %v634
    %v674 = vunpack.c.l.b16 %v635
    %v675 = vunpack.c.l.b16 %v636
    %v676 = vunpack.c.l.b16 %v637
    %v677 = vunpack.c.l.b16 %v638
    %v678 = vunpack.c.l.b16 %v639
    %v679 = vunpack.c.l.b16 %v640
    %v680 = vunpack.c.l.b16 %v641
    %v681 = vunpack.c.l.b16 %v642
    %v682 = vunpack.c.l.b16 %v643
    %v683 = vunpack.c.l.b16 %v644
    %v684 = vpack.c.b16 %v669, %v668
    %v685 = vpack.c.b16 %v671, %v670
    %v686 = vpack.c.b16 %v673, %v672
    %v687 = vpack.c.b16 %v675, %v674
    %v688 = vpack.c.b16 %v677, %v676
    %v689 = vpack.c.b16 %v679, %v678
    %v690 = vpack.c.b16 %v681, %v680
    %v691 = vpack.c.b16 %v683, %v682
    %700 = vmatprep.subr.bf16.mxu0 0
    %701 = vmatpush1.bf16.msra.mxu0 %v691
    %702 = vmatprep.subr.bf16.mxu0 0
    %703 = vmatpush1.bf16.msra.mxu0 %v690
    %704 = vmatprep.subr.bf16.mxu0 0
    %705 = vmatpush1.bf16.msra.mxu0 %v689
    %706 = vmatprep.subr.bf16.mxu0 0
    %707 = vmatpush1.bf16.msra.mxu0 %v688
    %708 = vmatprep.subr.bf16.mxu0 0
    %709 = vmatpush1.bf16.msra.mxu0 %v687
    %710 = vmatprep.subr.bf16.mxu0 0
    %711 = vmatpush1.bf16.msra.mxu0 %v686
    %712 = vmatprep.subr.bf16.mxu0 0
    %713 = vmatpush1.bf16.msra.mxu0 %v685
    %714 = vmatprep.subr.bf16.mxu0 0
    %715 = vmatpush1.bf16.msra.mxu0 %v684
    %716 = vmatprep.subr.bf16.mxu0 0
    %717 = vmatpush2.bf16.msra.mxu0 0
    %718 = vmatprep.subr.bf16.mxu0 0
    %719 = vmatpush2.bf16.msra.mxu0 0
    %720 = vmatprep.subr.bf16.mxu0 0
    %721 = vmatpush2.bf16.msra.mxu0 0
    %722 = vmatprep.subr.bf16.mxu0 0
    %723 = vmatpush2.bf16.msra.mxu0 0
    %724 = vmatprep.subr.bf16.mxu0 0
    %725 = vmatpush2.bf16.msra.mxu0 0
    %726 = vmatprep.subr.bf16.mxu0 0
    %727 = vmatpush2.bf16.msra.mxu0 0
    %728 = vmatprep.subr.bf16.mxu0 0
    %729 = vmatpush2.bf16.msra.mxu0 0
    %730 = vmatprep.subr.bf16.mxu0 0
    %731 = vmatpush2.bf16.msra.mxu0 0
    %732 = vmatprep.mubr.bf16.mxu0 0
    %733 = vmatmul.mubr.bf16.gmra.mxu0 %v627
    %v734 = vpop.f32.mrf.mxu0
    %v735 = vadd.f32 %v650, %v734
    %v736 = vpop.f32.mrf.mxu0
    %v737 = vpop.f32.mrf.mxu0
    %v738 = vpop.f32.mrf.mxu0
    %739 = vdwg.mxu0
    %v740 = vmax.f32 %v735, 0.0
    %741 = vst [vmem:[#allocation8 + $0x28] sm:$0xff] %v740
    %v742 = vld [vmem:[#allocation2 + $0x18] sm:$0xf]
    %s743 = scalar_lea.vmem [#allocation5], 384
    %v744 = vld [vmem:[%s743] sm:$0xf]
    %v745 = vld [vmem:[%s743 + $0x4] sm:$0xf]
    %v746 = vld [vmem:[%s743 + $0x8] sm:$0xf]
    %v747 = vld [vmem:[%s743 + $0xc] sm:$0xf]
    %v748 = vld [vmem:[%s743 + $0x10] sm:$0xf]
    %v749 = vld [vmem:[%s743 + $0x14] sm:$0xf]
    %v750 = vld [vmem:[%s743 + $0x18] sm:$0xf]
    %v751 = vld [vmem:[%s743 + $0x1c] sm:$0xf]
    %v752 = vld [vmem:[%s743 + $0x20] sm:$0xf]
    %v753 = vld [vmem:[%s743 + $0x24] sm:$0xf]
    %v754 = vld [vmem:[%s743 + $0x28] sm:$0xf]
    %v755 = vld [vmem:[%s743 + $0x2c] sm:$0xf]
    %v756 = vld [vmem:[%s743 + $0x30] sm:$0xf]
    %v757 = vld [vmem:[%s743 + $0x34] sm:$0xf]
    %v758 = vld [vmem:[%s743 + $0x38] sm:$0xf]
    %v759 = vld [vmem:[%s743 + $0x3c] sm:$0xf]
    %v760 = vld [vmem:[#allocation7 + $0x6] sm:$0x1]
    %v762 = vlaneseq
    %v763 = vshrl.u32 %v762, 7
    %v764 = vsub.s32 0, %v763
    %v765 = vrot.slane %v760, %v764
    %v783 = vunpack.c.l.b16 %v744
    %v784 = vunpack.c.l.b16 %v745
    %v785 = vunpack.c.l.b16 %v746
    %v786 = vunpack.c.l.b16 %v747
    %v787 = vunpack.c.l.b16 %v748
    %v788 = vunpack.c.l.b16 %v749
    %v789 = vunpack.c.l.b16 %v750
    %v790 = vunpack.c.l.b16 %v751
    %v791 = vunpack.c.l.b16 %v752
    %v792 = vunpack.c.l.b16 %v753
    %v793 = vunpack.c.l.b16 %v754
    %v794 = vunpack.c.l.b16 %v755
    %v795 = vunpack.c.l.b16 %v756
    %v796 = vunpack.c.l.b16 %v757
    %v797 = vunpack.c.l.b16 %v758
    %v798 = vunpack.c.l.b16 %v759
    %v799 = vpack.c.b16 %v784, %v783
    %v800 = vpack.c.b16 %v786, %v785
    %v801 = vpack.c.b16 %v788, %v787
    %v802 = vpack.c.b16 %v790, %v789
    %v803 = vpack.c.b16 %v792, %v791
    %v804 = vpack.c.b16 %v794, %v793
    %v805 = vpack.c.b16 %v796, %v795
    %v806 = vpack.c.b16 %v798, %v797
    %815 = vmatprep.subr.bf16.mxu0 0
    %816 = vmatpush1.bf16.msra.mxu0 %v806
    %817 = vmatprep.subr.bf16.mxu0 0
    %818 = vmatpush1.bf16.msra.mxu0 %v805
    %819 = vmatprep.subr.bf16.mxu0 0
    %820 = vmatpush1.bf16.msra.mxu0 %v804
    %821 = vmatprep.subr.bf16.mxu0 0
    %822 = vmatpush1.bf16.msra.mxu0 %v803
    %823 = vmatprep.subr.bf16.mxu0 0
    %824 = vmatpush1.bf16.msra.mxu0 %v802
    %825 = vmatprep.subr.bf16.mxu0 0
    %826 = vmatpush1.bf16.msra.mxu0 %v801
    %827 = vmatprep.subr.bf16.mxu0 0
    %828 = vmatpush1.bf16.msra.mxu0 %v800
    %829 = vmatprep.subr.bf16.mxu0 0
    %830 = vmatpush1.bf16.msra.mxu0 %v799
    %831 = vmatprep.subr.bf16.mxu0 0
    %832 = vmatpush2.bf16.msra.mxu0 0
    %833 = vmatprep.subr.bf16.mxu0 0
    %834 = vmatpush2.bf16.msra.mxu0 0
    %835 = vmatprep.subr.bf16.mxu0 0
    %836 = vmatpush2.bf16.msra.mxu0 0
    %837 = vmatprep.subr.bf16.mxu0 0
    %838 = vmatpush2.bf16.msra.mxu0 0
    %839 = vmatprep.subr.bf16.mxu0 0
    %840 = vmatpush2.bf16.msra.mxu0 0
    %841 = vmatprep.subr.bf16.mxu0 0
    %842 = vmatpush2.bf16.msra.mxu0 0
    %843 = vmatprep.subr.bf16.mxu0 0
    %844 = vmatpush2.bf16.msra.mxu0 0
    %845 = vmatprep.subr.bf16.mxu0 0
    %846 = vmatpush2.bf16.msra.mxu0 0
    %847 = vmatprep.mubr.bf16.mxu0 0
    %848 = vmatmul.mubr.bf16.gmra.mxu0 %v742
    %v849 = vpop.f32.mrf.mxu0
    %v850 = vadd.f32 %v765, %v849
    %v851 = vpop.f32.mrf.mxu0
    %v852 = vpop.f32.mrf.mxu0
    %v853 = vpop.f32.mrf.mxu0
    %854 = vdwg.mxu0
    %v855 = vmax.f32 %v850, 0.0
    %856 = vst [vmem:[#allocation8 + $0x30] sm:$0xff] %v855
    %v857 = vld [vmem:[#allocation2 + $0x1c] sm:$0xf]
    %s858 = scalar_lea.vmem [#allocation5], 448
    %v859 = vld [vmem:[%s858] sm:$0xf]
    %v860 = vld [vmem:[%s858 + $0x4] sm:$0xf]
    %v861 = vld [vmem:[%s858 + $0x8] sm:$0xf]
    %v862 = vld [vmem:[%s858 + $0xc] sm:$0xf]
    %v863 = vld [vmem:[%s858 + $0x10] sm:$0xf]
    %v864 = vld [vmem:[%s858 + $0x14] sm:$0xf]
    %v865 = vld [vmem:[%s858 + $0x18] sm:$0xf]
    %v866 = vld [vmem:[%s858 + $0x1c] sm:$0xf]
    %v867 = vld [vmem:[%s858 + $0x20] sm:$0xf]
    %v868 = vld [vmem:[%s858 + $0x24] sm:$0xf]
    %v869 = vld [vmem:[%s858 + $0x28] sm:$0xf]
    %v870 = vld [vmem:[%s858 + $0x2c] sm:$0xf]
    %v871 = vld [vmem:[%s858 + $0x30] sm:$0xf]
    %v872 = vld [vmem:[%s858 + $0x34] sm:$0xf]
    %v873 = vld [vmem:[%s858 + $0x38] sm:$0xf]
    %v874 = vld [vmem:[%s858 + $0x3c] sm:$0xf]
    %v875 = vld [vmem:[#allocation7 + $0x7] sm:$0x1]
    %v877 = vlaneseq
    %v878 = vshrl.u32 %v877, 7
    %v879 = vsub.s32 0, %v878
    %v880 = vrot.slane %v875, %v879
    %v898 = vunpack.c.l.b16 %v859
    %v899 = vunpack.c.l.b16 %v860
    %v900 = vunpack.c.l.b16 %v861
    %v901 = vunpack.c.l.b16 %v862
    %v902 = vunpack.c.l.b16 %v863
    %v903 = vunpack.c.l.b16 %v864
    %v904 = vunpack.c.l.b16 %v865
    %v905 = vunpack.c.l.b16 %v866
    %v906 = vunpack.c.l.b16 %v867
    %v907 = vunpack.c.l.b16 %v868
    %v908 = vunpack.c.l.b16 %v869
    %v909 = vunpack.c.l.b16 %v870
    %v910 = vunpack.c.l.b16 %v871
    %v911 = vunpack.c.l.b16 %v872
    %v912 = vunpack.c.l.b16 %v873
    %v913 = vunpack.c.l.b16 %v874
    %v914 = vpack.c.b16 %v899, %v898
    %v915 = vpack.c.b16 %v901, %v900
    %v916 = vpack.c.b16 %v903, %v902
    %v917 = vpack.c.b16 %v905, %v904
    %v918 = vpack.c.b16 %v907, %v906
    %v919 = vpack.c.b16 %v909, %v908
    %v920 = vpack.c.b16 %v911, %v910
    %v921 = vpack.c.b16 %v913, %v912
    %930 = vmatprep.subr.bf16.mxu0 0
    %931 = vmatpush1.bf16.msra.mxu0 %v921
    %932 = vmatprep.subr.bf16.mxu0 0
    %933 = vmatpush1.bf16.msra.mxu0 %v920
    %934 = vmatprep.subr.bf16.mxu0 0
    %935 = vmatpush1.bf16.msra.mxu0 %v919
    %936 = vmatprep.subr.bf16.mxu0 0
    %937 = vmatpush1.bf16.msra.mxu0 %v918
    %938 = vmatprep.subr.bf16.mxu0 0
    %939 = vmatpush1.bf16.msra.mxu0 %v917
    %940 = vmatprep.subr.bf16.mxu0 0
    %941 = vmatpush1.bf16.msra.mxu0 %v916
    %942 = vmatprep.subr.bf16.mxu0 0
    %943 = vmatpush1.bf16.msra.mxu0 %v915
    %944 = vmatprep.subr.bf16.mxu0 0
    %945 = vmatpush1.bf16.msra.mxu0 %v914
    %946 = vmatprep.subr.bf16.mxu0 0
    %947 = vmatpush2.bf16.msra.mxu0 0
    %948 = vmatprep.subr.bf16.mxu0 0
    %949 = vmatpush2.bf16.msra.mxu0 0
    %950 = vmatprep.subr.bf16.mxu0 0
    %951 = vmatpush2.bf16.msra.mxu0 0
    %952 = vmatprep.subr.bf16.mxu0 0
    %953 = vmatpush2.bf16.msra.mxu0 0
    %954 = vmatprep.subr.bf16.mxu0 0
    %955 = vmatpush2.bf16.msra.mxu0 0
    %956 = vmatprep.subr.bf16.mxu0 0
    %957 = vmatpush2.bf16.msra.mxu0 0
    %958 = vmatprep.subr.bf16.mxu0 0
    %959 = vmatpush2.bf16.msra.mxu0 0
    %960 = vmatprep.subr.bf16.mxu0 0
    %961 = vmatpush2.bf16.msra.mxu0 0
    %962 = vmatprep.mubr.bf16.mxu0 0
    %963 = vmatmul.mubr.bf16.gmra.mxu0 %v857
    %v964 = vpop.f32.mrf.mxu0
    %v965 = vadd.f32 %v880, %v964
    %v966 = vpop.f32.mrf.mxu0
    %v967 = vpop.f32.mrf.mxu0
    %v968 = vpop.f32.mrf.mxu0
    %969 = vdwg.mxu0
    %v970 = vmax.f32 %v965, 0.0
    %971 = vst [vmem:[#allocation8 + $0x38] sm:$0xff] %v970
    // Predicated region
    $region26: #{tpu_custom_call.1} parent=1 // pred_check
      _
    $region27: #{tpu_custom_call.1} parent=1 // pred_check_branch
      %973 = sbr.rel (0) target = $region29
    $region28: #{tpu_custom_call.1} parent=1 // pred_region
      %s975 = ssub.s32 1024, 1024
      %976 = vsyncadd [#allocation4], %s975
      %s978 = sshll.u32 [#allocation8], 4
      %s979 = int_to_ptr.vmem [resolvable:$true] %s978
      %981 = dma.vmem_to_hbm [thread:$0]  %s979, 1024, %s3, [#allocation4]
    $region29: #{tpu_custom_call.1} parent=1 // pred_fallthru
      _
    // Predicated region
    $region30: #{tpu_custom_call.1} parent=1 // pred_check
      _
    $region31: #{tpu_custom_call.1} parent=1 // pred_check_branch
      %983 = sbr.rel (0) target = $region33
    $region32: #{tpu_custom_call.1} parent=1 // pred_region
      %984 = dma.done [#allocation4], 1024
    $region33: #{tpu_custom_call.1} parent=1 // pred_fallthru
      _
    %985 = vsyncpa [#allocation3], 1
    %986 = vsyncpa [#allocation6], 1
    %987 = vsyncpa [#allocation4], 1

// kernel: tpu_custom_call.1
$region0: #{tpu_custom_call.1}
  #allocation0 [shape = 'u32[]', space=smem, size = 0x4, offset = 0x4, fixed_abs, tag = 'smem constant byte address 0x4 - core index']
  #allocation1 [shape = 'u32[144,128]{1,0:T(1,128)}', space=vmem, size = 0x12000, scoped, tag = 'internal scratch']
  %s0 = inlined_call_operand.hbm [shape: bf16[8,1024], index: 0, kind: input, shape index: {}]
  %s1 = inlined_call_operand.hbm [shape: bf16[8,128,128], index: 1, kind: input, shape index: {}]
  %s2 = inlined_call_operand.hbm [shape: f32[1,1024], index: 2, kind: input, shape index: {}]
  %s3 = inlined_call_operand.hbm [shape: f32[8,1024], index: 3, kind: output, shape index: {}]
  %s4 = sld [smem:[#allocation0]]
  $region34: #{tpu_custom_call.1} parent=0
    _
  %s6 = ssub.s32 1, %s4
  %s7 = scalar_select 0, %s6, %s4
  $region1: #{tpu_custom_call.1} parent=0
    #allocation2 [shape = 'u8[16384]{0}', space=vmem, size = 0x4000, scoped, tag = 'input window, operand 0, single buffered']
    #allocation3 [shape = 's32[1]{0}', space=sflag, size = 0x4, scoped, tag = 'scoped memory for tpu_custom_call.1']
    #allocation4 [shape = 's32[1]{0}', space=sflag, size = 0x4, scoped, tag = 'scoped memory for tpu_custom_call.1']
    #allocation5 [shape = 'u8[262144]{0}', space=vmem, size = 0x40000, scoped, tag = 'input window, operand 1, single buffered']
    #allocation6 [shape = 's32[1]{0}', space=sflag, size = 0x4, scoped, tag = 'scoped memory for tpu_custom_call.1']
    #allocation7 [shape = 'u8[4096]{0}', space=vmem, size = 0x1000, scoped, tag = 'input window, operand 2, single buffered']
    #allocation8 [shape = 'u8[32768]{0}', space=vmem, size = 0x8000, scoped, tag = 'output window, operand 0, single buffered']
    %8 = vsyncpa [#allocation3], 0
    %9 = vsyncpa [#allocation6], 0
    %10 = vsyncpa [#allocation4], 0
    // Predicated region
    $region2: #{tpu_custom_call.1} parent=1 // pred_check
      _
    $region3: #{tpu_custom_call.1} parent=1 // pred_check_branch
      %12 = sbr.rel (0) target = $region5
    $region4: #{tpu_custom_call.1} parent=1 // pred_region
      %s14 = ssub.s32 512, 512
      %15 = vsyncadd [#allocation3], %s14
      %s17 = sshll.u32 [#allocation2], 4
      %s18 = int_to_ptr.vmem [resolvable:$true] %s17
      %20 = dma.hbm_to_vmem [thread:$0]  %s0, 512, %s18, [#allocation3]
    $region5: #{tpu_custom_call.1} parent=1 // pred_fallthru
      _
    // Predicated region
    $region6: #{tpu_custom_call.1} parent=1 // pred_check
      _
    $region7: #{tpu_custom_call.1} parent=1 // pred_check_branch
      %22 = sbr.rel (0) target = $region9
    $region8: #{tpu_custom_call.1} parent=1 // pred_region
      %s24 = ssub.s32 8192, 8192
      %25 = vsyncadd [#allocation6], %s24
      %s26 = sshll.u32 [#allocation5], 4
      %s27 = int_to_ptr.vmem [resolvable:$true] %s26
      %32 = dma.hbm_to_vmem [thread:$0]  %s1, 8192, %s27, [#allocation6], 64, 64, 4
    $region9: #{tpu_custom_call.1} parent=1 // pred_fallthru
      _
    // Predicated region
    $region10: #{tpu_custom_call.1} parent=1 // pred_check
      _
    $region11: #{tpu_custom_call.1} parent=1 // pred_check_branch
      %34 = sbr.rel (0) target = $region13
    $region12: #{tpu_custom_call.1} parent=1 // pred_region
      %s36 = ssub.s32 128, 128
      %37 = vsyncadd [#allocation6], %s36
      %s39 = sshll.u32 [#allocation7], 4
      %s40 = int_to_ptr.vmem [resolvable:$true] %s39
      %42 = dma.hbm_to_vmem [thread:$0]  %s2, 128, %s40, [#allocation6]
    $region13: #{tpu_custom_call.1} parent=1 // pred_fallthru
      _
    // Predicated region
    $region14: #{tpu_custom_call.1} parent=1 // pred_check
      _
    $region15: #{tpu_custom_call.1} parent=1 // pred_check_branch
      %44 = sbr.rel (0) target = $region17
    $region16: #{tpu_custom_call.1} parent=1 // pred_region
      %45 = dma.done [#allocation3], 512
    $region17: #{tpu_custom_call.1} parent=1 // pred_fallthru
      _
    // Predicated region
    $region18: #{tpu_custom_call.1} parent=1 // pred_check
      _
    $region19: #{tpu_custom_call.1} parent=1 // pred_check_branch
      %47 = sbr.rel (0) target = $region21
    $region20: #{tpu_custom_call.1} parent=1 // pred_region
      %48 = dma.done [#allocation6], 8192
    $region21: #{tpu_custom_call.1} parent=1 // pred_fallthru
      _
    // Predicated region
    $region22: #{tpu_custom_call.1} parent=1 // pred_check
      _
    $region23: #{tpu_custom_call.1} parent=1 // pred_check_branch
      %50 = sbr.rel (0) target = $region25
    $region24: #{tpu_custom_call.1} parent=1 // pred_region
      %51 = dma.done [#allocation6], 128
    $region25: #{tpu_custom_call.1} parent=1 // pred_fallthru
      _
    %v53 = vld [vmem:[#allocation2] sm:$0xf]
    %v54 = vld [vmem:[#allocation5] sm:$0xf]
    %v55 = vld [vmem:[#allocation5 + $0x4] sm:$0xf]
    %v56 = vld [vmem:[#allocation5 + $0x8] sm:$0xf]
    %v57 = vld [vmem:[#allocation5 + $0xc] sm:$0xf]
    %v58 = vld [vmem:[#allocation5 + $0x10] sm:$0xf]
    %v59 = vld [vmem:[#allocation5 + $0x14] sm:$0xf]
    %v60 = vld [vmem:[#allocation5 + $0x18] sm:$0xf]
    %v61 = vld [vmem:[#allocation5 + $0x1c] sm:$0xf]
    %v62 = vld [vmem:[#allocation5 + $0x20] sm:$0xf]
    %v63 = vld [vmem:[#allocation5 + $0x24] sm:$0xf]
    %v64 = vld [vmem:[#allocation5 + $0x28] sm:$0xf]
    %v65 = vld [vmem:[#allocation5 + $0x2c] sm:$0xf]
    %v66 = vld [vmem:[#allocation5 + $0x30] sm:$0xf]
    %v67 = vld [vmem:[#allocation5 + $0x34] sm:$0xf]
    %v68 = vld [vmem:[#allocation5 + $0x38] sm:$0xf]
    %v69 = vld [vmem:[#allocation5 + $0x3c] sm:$0xf]
    %v70 = vld [vmem:[#allocation7] sm:$0x1]
    %v72 = vlaneseq
    %v73 = vshrl.u32 %v72, 7
    %v74 = vsub.s32 0, %v73
    %v75 = vrot.slane %v70, %v74
    %v93 = vunpack.c.l.b16 %v54
    %v94 = vunpack.c.l.b16 %v55
    %v95 = vunpack.c.l.b16 %v56
    %v96 = vunpack.c.l.b16 %v57
    %v97 = vunpack.c.l.b16 %v58
    %v98 = vunpack.c.l.b16 %v59
    %v99 = vunpack.c.l.b16 %v60
    %v100 = vunpack.c.l.b16 %v61
    %v101 = vunpack.c.l.b16 %v62
    %v102 = vunpack.c.l.b16 %v63
    %v103 = vunpack.c.l.b16 %v64
    %v104 = vunpack.c.l.b16 %v65
    %v105 = vunpack.c.l.b16 %v66
    %v106 = vunpack.c.l.b16 %v67
    %v107 = vunpack.c.l.b16 %v68
    %v108 = vunpack.c.l.b16 %v69
    %v109 = vpack.c.b16 %v94, %v93
    %v110 = vpack.c.b16 %v96, %v95
    %v111 = vpack.c.b16 %v98, %v97
    %v112 = vpack.c.b16 %v100, %v99
    %v113 = vpack.c.b16 %v102, %v101
    %v114 = vpack.c.b16 %v104, %v103
    %v115 = vpack.c.b16 %v106, %v105
    %v116 = vpack.c.b16 %v108, %v107
    %125 = vmatprep.subr.bf16.mxu0 0
    %126 = vmatpush1.bf16.msra.mxu0 %v116
    %127 = vmatprep.subr.bf16.mxu0 0
    %128 = vmatpush1.bf16.msra.mxu0 %v115
    %129 = vmatprep.subr.bf16.mxu0 0
    %130 = vmatpush1.bf16.msra.mxu0 %v114
    %131 = vmatprep.subr.bf16.mxu0 0
    %132 = vmatpush1.bf16.msra.mxu0 %v113
    %133 = vmatprep.subr.bf16.mxu0 0
    %134 = vmatpush1.bf16.msra.mxu0 %v112
    %135 = vmatprep.subr.bf16.mxu0 0
    %136 = vmatpush1.bf16.msra.mxu0 %v111
    %137 = vmatprep.subr.bf16.mxu0 0
    %138 = vmatpush1.bf16.msra.mxu0 %v110
    %139 = vmatprep.subr.bf16.mxu0 0
    %140 = vmatpush1.bf16.msra.mxu0 %v109
    %141 = vmatprep.subr.bf16.mxu0 0
    %142 = vmatpush2.bf16.msra.mxu0 0
    %143 = vmatprep.subr.bf16.mxu0 0
    %144 = vmatpush2.bf16.msra.mxu0 0
    %145 = vmatprep.subr.bf16.mxu0 0
    %146 = vmatpush2.bf16.msra.mxu0 0
    %147 = vmatprep.subr.bf16.mxu0 0
    %148 = vmatpush2.bf16.msra.mxu0 0
    %149 = vmatprep.subr.bf16.mxu0 0
    %150 = vmatpush2.bf16.msra.mxu0 0
    %151 = vmatprep.subr.bf16.mxu0 0
    %152 = vmatpush2.bf16.msra.mxu0 0
    %153 = vmatprep.subr.bf16.mxu0 0
    %154 = vmatpush2.bf16.msra.mxu0 0
    %155 = vmatprep.subr.bf16.mxu0 0
    %156 = vmatpush2.bf16.msra.mxu0 0
    %157 = vmatprep.mubr.bf16.mxu0 0
    %158 = vmatmul.mubr.bf16.gmra.mxu0 %v53
    %v159 = vpop.f32.mrf.mxu0
    %v160 = vadd.f32 %v75, %v159
    %v161 = vpop.f32.mrf.mxu0
    %v162 = vpop.f32.mrf.mxu0
    %v163 = vpop.f32.mrf.mxu0
    %164 = vdwg.mxu0
    %v165 = vmax.f32 %v160, 0.0
    %166 = vst [vmem:[#allocation8] sm:$0xff] %v165
    %v167 = vld [vmem:[#allocation2 + $0x4] sm:$0xf]
    %s168 = scalar_lea.vmem [#allocation5], 64
    %v169 = vld [vmem:[%s168] sm:$0xf]
    %v170 = vld [vmem:[%s168 + $0x4] sm:$0xf]
    %v171 = vld [vmem:[%s168 + $0x8] sm:$0xf]
    %v172 = vld [vmem:[%s168 + $0xc] sm:$0xf]
    %v173 = vld [vmem:[%s168 + $0x10] sm:$0xf]
    %v174 = vld [vmem:[%s168 + $0x14] sm:$0xf]
    %v175 = vld [vmem:[%s168 + $0x18] sm:$0xf]
    %v176 = vld [vmem:[%s168 + $0x1c] sm:$0xf]
    %v177 = vld [vmem:[%s168 + $0x20] sm:$0xf]
    %v178 = vld [vmem:[%s168 + $0x24] sm:$0xf]
    %v179 = vld [vmem:[%s168 + $0x28] sm:$0xf]
    %v180 = vld [vmem:[%s168 + $0x2c] sm:$0xf]
    %v181 = vld [vmem:[%s168 + $0x30] sm:$0xf]
    %v182 = vld [vmem:[%s168 + $0x34] sm:$0xf]
    %v183 = vld [vmem:[%s168 + $0x38] sm:$0xf]
    %v184 = vld [vmem:[%s168 + $0x3c] sm:$0xf]
    %v185 = vld [vmem:[#allocation7 + $0x1] sm:$0x1]
    %v187 = vlaneseq
    %v188 = vshrl.u32 %v187, 7
    %v189 = vsub.s32 0, %v188
    %v190 = vrot.slane %v185, %v189
    %v208 = vunpack.c.l.b16 %v169
    %v209 = vunpack.c.l.b16 %v170
    %v210 = vunpack.c.l.b16 %v171
    %v211 = vunpack.c.l.b16 %v172
    %v212 = vunpack.c.l.b16 %v173
    %v213 = vunpack.c.l.b16 %v174
    %v214 = vunpack.c.l.b16 %v175
    %v215 = vunpack.c.l.b16 %v176
    %v216 = vunpack.c.l.b16 %v177
    %v217 = vunpack.c.l.b16 %v178
    %v218 = vunpack.c.l.b16 %v179
    %v219 = vunpack.c.l.b16 %v180
    %v220 = vunpack.c.l.b16 %v181
    %v221 = vunpack.c.l.b16 %v182
    %v222 = vunpack.c.l.b16 %v183
    %v223 = vunpack.c.l.b16 %v184
    %v224 = vpack.c.b16 %v209, %v208
    %v225 = vpack.c.b16 %v211, %v210
    %v226 = vpack.c.b16 %v213, %v212
    %v227 = vpack.c.b16 %v215, %v214
    %v228 = vpack.c.b16 %v217, %v216
    %v229 = vpack.c.b16 %v219, %v218
    %v230 = vpack.c.b16 %v221, %v220
    %v231 = vpack.c.b16 %v223, %v222
    %240 = vmatprep.subr.bf16.mxu0 0
    %241 = vmatpush1.bf16.msra.mxu0 %v231
    %242 = vmatprep.subr.bf16.mxu0 0
    %243 = vmatpush1.bf16.msra.mxu0 %v230
    %244 = vmatprep.subr.bf16.mxu0 0
    %245 = vmatpush1.bf16.msra.mxu0 %v229
    %246 = vmatprep.subr.bf16.mxu0 0
    %247 = vmatpush1.bf16.msra.mxu0 %v228
    %248 = vmatprep.subr.bf16.mxu0 0
    %249 = vmatpush1.bf16.msra.mxu0 %v227
    %250 = vmatprep.subr.bf16.mxu0 0
    %251 = vmatpush1.bf16.msra.mxu0 %v226
    %252 = vmatprep.subr.bf16.mxu0 0
    %253 = vmatpush1.bf16.msra.mxu0 %v225
    %254 = vmatprep.subr.bf16.mxu0 0
    %255 = vmatpush1.bf16.msra.mxu0 %v224
    %256 = vmatprep.subr.bf16.mxu0 0
    %257 = vmatpush2.bf16.msra.mxu0 0
    %258 = vmatprep.subr.bf16.mxu0 0
    %259 = vmatpush2.bf16.msra.mxu0 0
    %260 = vmatprep.subr.bf16.mxu0 0
    %261 = vmatpush2.bf16.msra.mxu0 0
    %262 = vmatprep.subr.bf16.mxu0 0
    %263 = vmatpush2.bf16.msra.mxu0 0
    %264 = vmatprep.subr.bf16.mxu0 0
    %265 = vmatpush2.bf16.msra.mxu0 0
    %266 = vmatprep.subr.bf16.mxu0 0
    %267 = vmatpush2.bf16.msra.mxu0 0
    %268 = vmatprep.subr.bf16.mxu0 0
    %269 = vmatpush2.bf16.msra.mxu0 0
    %270 = vmatprep.subr.bf16.mxu0 0
    %271 = vmatpush2.bf16.msra.mxu0 0
    %272 = vmatprep.mubr.bf16.mxu0 0
    %273 = vmatmul.mubr.bf16.gmra.mxu0 %v167
    %v274 = vpop.f32.mrf.mxu0
    %v275 = vadd.f32 %v190, %v274
    %v276 = vpop.f32.mrf.mxu0
    %v277 = vpop.f32.mrf.mxu0
    %v278 = vpop.f32.mrf.mxu0
    %279 = vdwg.mxu0
    %v280 = vmax.f32 %v275, 0.0
    %281 = vst [vmem:[#allocation8 + $0x8] sm:$0xff] %v280
    %v282 = vld [vmem:[#allocation2 + $0x8] sm:$0xf]
    %s283 = scalar_lea.vmem [#allocation5], 128
    %v284 = vld [vmem:[%s283] sm:$0xf]
    %v285 = vld [vmem:[%s283 + $0x4] sm:$0xf]
    %v286 = vld [vmem:[%s283 + $0x8] sm:$0xf]
    %v287 = vld [vmem:[%s283 + $0xc] sm:$0xf]
    %v288 = vld [vmem:[%s283 + $0x10] sm:$0xf]
    %v289 = vld [vmem:[%s283 + $0x14] sm:$0xf]
    %v290 = vld [vmem:[%s283 + $0x18] sm:$0xf]
    %v291 = vld [vmem:[%s283 + $0x1c] sm:$0xf]
    %v292 = vld [vmem:[%s283 + $0x20] sm:$0xf]
    %v293 = vld [vmem:[%s283 + $0x24] sm:$0xf]
    %v294 = vld [vmem:[%s283 + $0x28] sm:$0xf]
    %v295 = vld [vmem:[%s283 + $0x2c] sm:$0xf]
    %v296 = vld [vmem:[%s283 + $0x30] sm:$0xf]
    %v297 = vld [vmem:[%s283 + $0x34] sm:$0xf]
    %v298 = vld [vmem:[%s283 + $0x38] sm:$0xf]
    %v299 = vld [vmem:[%s283 + $0x3c] sm:$0xf]
    %v300 = vld [vmem:[#allocation7 + $0x2] sm:$0x1]
    %v302 = vlaneseq
    %v303 = vshrl.u32 %v302, 7
    %v304 = vsub.s32 0, %v303
    %v305 = vrot.slane %v300, %v304
    %v323 = vunpack.c.l.b16 %v284
    %v324 = vunpack.c.l.b16 %v285
    %v325 = vunpack.c.l.b16 %v286
    %v326 = vunpack.c.l.b16 %v287
    %v327 = vunpack.c.l.b16 %v288
    %v328 = vunpack.c.l.b16 %v289
    %v329 = vunpack.c.l.b16 %v290
    %v330 = vunpack.c.l.b16 %v291
    %v331 = vunpack.c.l.b16 %v292
    %v332 = vunpack.c.l.b16 %v293
    %v333 = vunpack.c.l.b16 %v294
    %v334 = vunpack.c.l.b16 %v295
    %v335 = vunpack.c.l.b16 %v296
    %v336 = vunpack.c.l.b16 %v297
    %v337 = vunpack.c.l.b16 %v298
    %v338 = vunpack.c.l.b16 %v299
    %v339 = vpack.c.b16 %v324, %v323
    %v340 = vpack.c.b16 %v326, %v325
    %v341 = vpack.c.b16 %v328, %v327
    %v342 = vpack.c.b16 %v330, %v329
    %v343 = vpack.c.b16 %v332, %v331
    %v344 = vpack.c.b16 %v334, %v333
    %v345 = vpack.c.b16 %v336, %v335
    %v346 = vpack.c.b16 %v338, %v337
    %355 = vmatprep.subr.bf16.mxu0 0
    %356 = vmatpush1.bf16.msra.mxu0 %v346
    %357 = vmatprep.subr.bf16.mxu0 0
    %358 = vmatpush1.bf16.msra.mxu0 %v345
    %359 = vmatprep.subr.bf16.mxu0 0
    %360 = vmatpush1.bf16.msra.mxu0 %v344
    %361 = vmatprep.subr.bf16.mxu0 0
    %362 = vmatpush1.bf16.msra.mxu0 %v343
    %363 = vmatprep.subr.bf16.mxu0 0
    %364 = vmatpush1.bf16.msra.mxu0 %v342
    %365 = vmatprep.subr.bf16.mxu0 0
    %366 = vmatpush1.bf16.msra.mxu0 %v341
    %367 = vmatprep.subr.bf16.mxu0 0
    %368 = vmatpush1.bf16.msra.mxu0 %v340
    %369 = vmatprep.subr.bf16.mxu0 0
    %370 = vmatpush1.bf16.msra.mxu0 %v339
    %371 = vmatprep.subr.bf16.mxu0 0
    %372 = vmatpush2.bf16.msra.mxu0 0
    %373 = vmatprep.subr.bf16.mxu0 0
    %374 = vmatpush2.bf16.msra.mxu0 0
    %375 = vmatprep.subr.bf16.mxu0 0
    %376 = vmatpush2.bf16.msra.mxu0 0
    %377 = vmatprep.subr.bf16.mxu0 0
    %378 = vmatpush2.bf16.msra.mxu0 0
    %379 = vmatprep.subr.bf16.mxu0 0
    %380 = vmatpush2.bf16.msra.mxu0 0
    %381 = vmatprep.subr.bf16.mxu0 0
    %382 = vmatpush2.bf16.msra.mxu0 0
    %383 = vmatprep.subr.bf16.mxu0 0
    %384 = vmatpush2.bf16.msra.mxu0 0
    %385 = vmatprep.subr.bf16.mxu0 0
    %386 = vmatpush2.bf16.msra.mxu0 0
    %387 = vmatprep.mubr.bf16.mxu0 0
    %388 = vmatmul.mubr.bf16.gmra.mxu0 %v282
    %v389 = vpop.f32.mrf.mxu0
    %v390 = vadd.f32 %v305, %v389
    %v391 = vpop.f32.mrf.mxu0
    %v392 = vpop.f32.mrf.mxu0
    %v393 = vpop.f32.mrf.mxu0
    %394 = vdwg.mxu0
    %v395 = vmax.f32 %v390, 0.0
    %396 = vst [vmem:[#allocation8 + $0x10] sm:$0xff] %v395
    %v397 = vld [vmem:[#allocation2 + $0xc] sm:$0xf]
    %s398 = scalar_lea.vmem [#allocation5], 192
    %v399 = vld [vmem:[%s398] sm:$0xf]
    %v400 = vld [vmem:[%s398 + $0x4] sm:$0xf]
    %v401 = vld [vmem:[%s398 + $0x8] sm:$0xf]
    %v402 = vld [vmem:[%s398 + $0xc] sm:$0xf]
    %v403 = vld [vmem:[%s398 + $0x10] sm:$0xf]
    %v404 = vld [vmem:[%s398 + $0x14] sm:$0xf]
    %v405 = vld [vmem:[%s398 + $0x18] sm:$0xf]
    %v406 = vld [vmem:[%s398 + $0x1c] sm:$0xf]
    %v407 = vld [vmem:[%s398 + $0x20] sm:$0xf]
    %v408 = vld [vmem:[%s398 + $0x24] sm:$0xf]
    %v409 = vld [vmem:[%s398 + $0x28] sm:$0xf]
    %v410 = vld [vmem:[%s398 + $0x2c] sm:$0xf]
    %v411 = vld [vmem:[%s398 + $0x30] sm:$0xf]
    %v412 = vld [vmem:[%s398 + $0x34] sm:$0xf]
    %v413 = vld [vmem:[%s398 + $0x38] sm:$0xf]
    %v414 = vld [vmem:[%s398 + $0x3c] sm:$0xf]
    %v415 = vld [vmem:[#allocation7 + $0x3] sm:$0x1]
    %v417 = vlaneseq
    %v418 = vshrl.u32 %v417, 7
    %v419 = vsub.s32 0, %v418
    %v420 = vrot.slane %v415, %v419
    %v438 = vunpack.c.l.b16 %v399
    %v439 = vunpack.c.l.b16 %v400
    %v440 = vunpack.c.l.b16 %v401
    %v441 = vunpack.c.l.b16 %v402
    %v442 = vunpack.c.l.b16 %v403
    %v443 = vunpack.c.l.b16 %v404
    %v444 = vunpack.c.l.b16 %v405
    %v445 = vunpack.c.l.b16 %v406
    %v446 = vunpack.c.l.b16 %v407
    %v447 = vunpack.c.l.b16 %v408
    %v448 = vunpack.c.l.b16 %v409
    %v449 = vunpack.c.l.b16 %v410
    %v450 = vunpack.c.l.b16 %v411
    %v451 = vunpack.c.l.b16 %v412
    %v452 = vunpack.c.l.b16 %v413
    %v453 = vunpack.c.l.b16 %v414
    %v454 = vpack.c.b16 %v439, %v438
    %v455 = vpack.c.b16 %v441, %v440
    %v456 = vpack.c.b16 %v443, %v442
    %v457 = vpack.c.b16 %v445, %v444
    %v458 = vpack.c.b16 %v447, %v446
    %v459 = vpack.c.b16 %v449, %v448
    %v460 = vpack.c.b16 %v451, %v450
    %v461 = vpack.c.b16 %v453, %v452
    %470 = vmatprep.subr.bf16.mxu0 0
    %471 = vmatpush1.bf16.msra.mxu0 %v461
    %472 = vmatprep.subr.bf16.mxu0 0
    %473 = vmatpush1.bf16.msra.mxu0 %v460
    %474 = vmatprep.subr.bf16.mxu0 0
    %475 = vmatpush1.bf16.msra.mxu0 %v459
    %476 = vmatprep.subr.bf16.mxu0 0
    %477 = vmatpush1.bf16.msra.mxu0 %v458
    %478 = vmatprep.subr.bf16.mxu0 0
    %479 = vmatpush1.bf16.msra.mxu0 %v457
    %480 = vmatprep.subr.bf16.mxu0 0
    %481 = vmatpush1.bf16.msra.mxu0 %v456
    %482 = vmatprep.subr.bf16.mxu0 0
    %483 = vmatpush1.bf16.msra.mxu0 %v455
    %484 = vmatprep.subr.bf16.mxu0 0
    %485 = vmatpush1.bf16.msra.mxu0 %v454
    %486 = vmatprep.subr.bf16.mxu0 0
    %487 = vmatpush2.bf16.msra.mxu0 0
    %488 = vmatprep.subr.bf16.mxu0 0
    %489 = vmatpush2.bf16.msra.mxu0 0
    %490 = vmatprep.subr.bf16.mxu0 0
    %491 = vmatpush2.bf16.msra.mxu0 0
    %492 = vmatprep.subr.bf16.mxu0 0
    %493 = vmatpush2.bf16.msra.mxu0 0
    %494 = vmatprep.subr.bf16.mxu0 0
    %495 = vmatpush2.bf16.msra.mxu0 0
    %496 = vmatprep.subr.bf16.mxu0 0
    %497 = vmatpush2.bf16.msra.mxu0 0
    %498 = vmatprep.subr.bf16.mxu0 0
    %499 = vmatpush2.bf16.msra.mxu0 0
    %500 = vmatprep.subr.bf16.mxu0 0
    %501 = vmatpush2.bf16.msra.mxu0 0
    %502 = vmatprep.mubr.bf16.mxu0 0
    %503 = vmatmul.mubr.bf16.gmra.mxu0 %v397
    %v504 = vpop.f32.mrf.mxu0
    %v505 = vadd.f32 %v420, %v504
    %v506 = vpop.f32.mrf.mxu0
    %v507 = vpop.f32.mrf.mxu0
    %v508 = vpop.f32.mrf.mxu0
    %509 = vdwg.mxu0
    %v510 = vmax.f32 %v505, 0.0
    %511 = vst [vmem:[#allocation8 + $0x18] sm:$0xff] %v510
    %v512 = vld [vmem:[#allocation2 + $0x10] sm:$0xf]
    %s513 = scalar_lea.vmem [#allocation5], 256
    %v514 = vld [vmem:[%s513] sm:$0xf]
    %v515 = vld [vmem:[%s513 + $0x4] sm:$0xf]
    %v516 = vld [vmem:[%s513 + $0x8] sm:$0xf]
    %v517 = vld [vmem:[%s513 + $0xc] sm:$0xf]
    %v518 = vld [vmem:[%s513 + $0x10] sm:$0xf]
    %v519 = vld [vmem:[%s513 + $0x14] sm:$0xf]
    %v520 = vld [vmem:[%s513 + $0x18] sm:$0xf]
    %v521 = vld [vmem:[%s513 + $0x1c] sm:$0xf]
    %v522 = vld [vmem:[%s513 + $0x20] sm:$0xf]
    %v523 = vld [vmem:[%s513 + $0x24] sm:$0xf]
    %v524 = vld [vmem:[%s513 + $0x28] sm:$0xf]
    %v525 = vld [vmem:[%s513 + $0x2c] sm:$0xf]
    %v526 = vld [vmem:[%s513 + $0x30] sm:$0xf]
    %v527 = vld [vmem:[%s513 + $0x34] sm:$0xf]
    %v528 = vld [vmem:[%s513 + $0x38] sm:$0xf]
    %v529 = vld [vmem:[%s513 + $0x3c] sm:$0xf]
    %v530 = vld [vmem:[#allocation7 + $0x4] sm:$0x1]
    %v532 = vlaneseq
    %v533 = vshrl.u32 %v532, 7
    %v534 = vsub.s32 0, %v533
    %v535 = vrot.slane %v530, %v534
    %v553 = vunpack.c.l.b16 %v514
    %v554 = vunpack.c.l.b16 %v515
    %v555 = vunpack.c.l.b16 %v516
    %v556 = vunpack.c.l.b16 %v517
    %v557 = vunpack.c.l.b16 %v518
    %v558 = vunpack.c.l.b16 %v519
    %v559 = vunpack.c.l.b16 %v520
    %v560 = vunpack.c.l.b16 %v521
    %v561 = vunpack.c.l.b16 %v522
    %v562 = vunpack.c.l.b16 %v523
    %v563 = vunpack.c.l.b16 %v524
    %v564 = vunpack.c.l.b16 %v525
    %v565 = vunpack.c.l.b16 %v526
    %v566 = vunpack.c.l.b16 %v527
    %v567 = vunpack.c.l.b16 %v528
    %v568 = vunpack.c.l.b16 %v529
    %v569 = vpack.c.b16 %v554, %v553
    %v570 = vpack.c.b16 %v556, %v555
    %v571 = vpack.c.b16 %v558, %v557
    %v572 = vpack.c.b16 %v560, %v559
    %v573 = vpack.c.b16 %v562, %v561
    %v574 = vpack.c.b16 %v564, %v563
    %v575 = vpack.c.b16 %v566, %v565
    %v576 = vpack.c.b16 %v568, %v567
    %585 = vmatprep.subr.bf16.mxu0 0
    %586 = vmatpush1.bf16.msra.mxu0 %v576
    %587 = vmatprep.subr.bf16.mxu0 0
    %588 = vmatpush1.bf16.msra.mxu0 %v575
    %589 = vmatprep.subr.bf16.mxu0 0
    %590 = vmatpush1.bf16.msra.mxu0 %v574
    %591 = vmatprep.subr.bf16.mxu0 0
    %592 = vmatpush1.bf16.msra.mxu0 %v573
    %593 = vmatprep.subr.bf16.mxu0 0
    %594 = vmatpush1.bf16.msra.mxu0 %v572
    %595 = vmatprep.subr.bf16.mxu0 0
    %596 = vmatpush1.bf16.msra.mxu0 %v571
    %597 = vmatprep.subr.bf16.mxu0 0
    %598 = vmatpush1.bf16.msra.mxu0 %v570
    %599 = vmatprep.subr.bf16.mxu0 0
    %600 = vmatpush1.bf16.msra.mxu0 %v569
    %601 = vmatprep.subr.bf16.mxu0 0
    %602 = vmatpush2.bf16.msra.mxu0 0
    %603 = vmatprep.subr.bf16.mxu0 0
    %604 = vmatpush2.bf16.msra.mxu0 0
    %605 = vmatprep.subr.bf16.mxu0 0
    %606 = vmatpush2.bf16.msra.mxu0 0
    %607 = vmatprep.subr.bf16.mxu0 0
    %608 = vmatpush2.bf16.msra.mxu0 0
    %609 = vmatprep.subr.bf16.mxu0 0
    %610 = vmatpush2.bf16.msra.mxu0 0
    %611 = vmatprep.subr.bf16.mxu0 0
    %612 = vmatpush2.bf16.msra.mxu0 0
    %613 = vmatprep.subr.bf16.mxu0 0
    %614 = vmatpush2.bf16.msra.mxu0 0
    %615 = vmatprep.subr.bf16.mxu0 0
    %616 = vmatpush2.bf16.msra.mxu0 0
    %617 = vmatprep.mubr.bf16.mxu0 0
    %618 = vmatmul.mubr.bf16.gmra.mxu0 %v512
    %v619 = vpop.f32.mrf.mxu0
    %v620 = vadd.f32 %v535, %v619
    %v621 = vpop.f32.mrf.mxu0
    %v622 = vpop.f32.mrf.mxu0
    %v623 = vpop.f32.mrf.mxu0
    %624 = vdwg.mxu0
    %v625 = vmax.f32 %v620, 0.0
    %626 = vst [vmem:[#allocation8 + $0x20] sm:$0xff] %v625
    %v627 = vld [vmem:[#allocation2 + $0x14] sm:$0xf]
    %s628 = scalar_lea.vmem [#allocation5], 320
    %v629 = vld [vmem:[%s628] sm:$0xf]
    %v630 = vld [vmem:[%s628 + $0x4] sm:$0xf]
    %v631 = vld [vmem:[%s628 + $0x8] sm:$0xf]
    %v632 = vld [vmem:[%s628 + $0xc] sm:$0xf]
    %v633 = vld [vmem:[%s628 + $0x10] sm:$0xf]
    %v634 = vld [vmem:[%s628 + $0x14] sm:$0xf]
    %v635 = vld [vmem:[%s628 + $0x18] sm:$0xf]
    %v636 = vld [vmem:[%s628 + $0x1c] sm:$0xf]
    %v637 = vld [vmem:[%s628 + $0x20] sm:$0xf]
    %v638 = vld [vmem:[%s628 + $0x24] sm:$0xf]
    %v639 = vld [vmem:[%s628 + $0x28] sm:$0xf]
    %v640 = vld [vmem:[%s628 + $0x2c] sm:$0xf]
    %v641 = vld [vmem:[%s628 + $0x30] sm:$0xf]
    %v642 = vld [vmem:[%s628 + $0x34] sm:$0xf]
    %v643 = vld [vmem:[%s628 + $0x38] sm:$0xf]
    %v644 = vld [vmem:[%s628 + $0x3c] sm:$0xf]
    %v645 = vld [vmem:[#allocation7 + $0x5] sm:$0x1]
    %v647 = vlaneseq
    %v648 = vshrl.u32 %v647, 7
    %v649 = vsub.s32 0, %v648
    %v650 = vrot.slane %v645, %v649
    %v668 = vunpack.c.l.b16 %v629
    %v669 = vunpack.c.l.b16 %v630
    %v670 = vunpack.c.l.b16 %v631
    %v671 = vunpack.c.l.b16 %v632
    %v672 = vunpack.c.l.b16 %v633
    %v673 = vunpack.c.l.b16 %v634
    %v674 = vunpack.c.l.b16 %v635
    %v675 = vunpack.c.l.b16 %v636
    %v676 = vunpack.c.l.b16 %v637
    %v677 = vunpack.c.l.b16 %v638
    %v678 = vunpack.c.l.b16 %v639
    %v679 = vunpack.c.l.b16 %v640
    %v680 = vunpack.c.l.b16 %v641
    %v681 = vunpack.c.l.b16 %v642
    %v682 = vunpack.c.l.b16 %v643
    %v683 = vunpack.c.l.b16 %v644
    %v684 = vpack.c.b16 %v669, %v668
    %v685 = vpack.c.b16 %v671, %v670
    %v686 = vpack.c.b16 %v673, %v672
    %v687 = vpack.c.b16 %v675, %v674
    %v688 = vpack.c.b16 %v677, %v676
    %v689 = vpack.c.b16 %v679, %v678
    %v690 = vpack.c.b16 %v681, %v680
    %v691 = vpack.c.b16 %v683, %v682
    %700 = vmatprep.subr.bf16.mxu0 0
    %701 = vmatpush1.bf16.msra.mxu0 %v691
    %702 = vmatprep.subr.bf16.mxu0 0
    %703 = vmatpush1.bf16.msra.mxu0 %v690
    %704 = vmatprep.subr.bf16.mxu0 0
    %705 = vmatpush1.bf16.msra.mxu0 %v689
    %706 = vmatprep.subr.bf16.mxu0 0
    %707 = vmatpush1.bf16.msra.mxu0 %v688
    %708 = vmatprep.subr.bf16.mxu0 0
    %709 = vmatpush1.bf16.msra.mxu0 %v687
    %710 = vmatprep.subr.bf16.mxu0 0
    %711 = vmatpush1.bf16.msra.mxu0 %v686
    %712 = vmatprep.subr.bf16.mxu0 0
    %713 = vmatpush1.bf16.msra.mxu0 %v685
    %714 = vmatprep.subr.bf16.mxu0 0
    %715 = vmatpush1.bf16.msra.mxu0 %v684
    %716 = vmatprep.subr.bf16.mxu0 0
    %717 = vmatpush2.bf16.msra.mxu0 0
    %718 = vmatprep.subr.bf16.mxu0 0
    %719 = vmatpush2.bf16.msra.mxu0 0
    %720 = vmatprep.subr.bf16.mxu0 0
    %721 = vmatpush2.bf16.msra.mxu0 0
    %722 = vmatprep.subr.bf16.mxu0 0
    %723 = vmatpush2.bf16.msra.mxu0 0
    %724 = vmatprep.subr.bf16.mxu0 0
    %725 = vmatpush2.bf16.msra.mxu0 0
    %726 = vmatprep.subr.bf16.mxu0 0
    %727 = vmatpush2.bf16.msra.mxu0 0
    %728 = vmatprep.subr.bf16.mxu0 0
    %729 = vmatpush2.bf16.msra.mxu0 0
    %730 = vmatprep.subr.bf16.mxu0 0
    %731 = vmatpush2.bf16.msra.mxu0 0
    %732 = vmatprep.mubr.bf16.mxu0 0
    %733 = vmatmul.mubr.bf16.gmra.mxu0 %v627
    %v734 = vpop.f32.mrf.mxu0
    %v735 = vadd.f32 %v650, %v734
    %v736 = vpop.f32.mrf.mxu0
    %v737 = vpop.f32.mrf.mxu0
    %v738 = vpop.f32.mrf.mxu0
    %739 = vdwg.mxu0
    %v740 = vmax.f32 %v735, 0.0
    %741 = vst [vmem:[#allocation8 + $0x28] sm:$0xff] %v740
    %v742 = vld [vmem:[#allocation2 + $0x18] sm:$0xf]
    %s743 = scalar_lea.vmem [#allocation5], 384
    %v744 = vld [vmem:[%s743] sm:$0xf]
    %v745 = vld [vmem:[%s743 + $0x4] sm:$0xf]
    %v746 = vld [vmem:[%s743 + $0x8] sm:$0xf]
    %v747 = vld [vmem:[%s743 + $0xc] sm:$0xf]
    %v748 = vld [vmem:[%s743 + $0x10] sm:$0xf]
    %v749 = vld [vmem:[%s743 + $0x14] sm:$0xf]
    %v750 = vld [vmem:[%s743 + $0x18] sm:$0xf]
    %v751 = vld [vmem:[%s743 + $0x1c] sm:$0xf]
    %v752 = vld [vmem:[%s743 + $0x20] sm:$0xf]
    %v753 = vld [vmem:[%s743 + $0x24] sm:$0xf]
    %v754 = vld [vmem:[%s743 + $0x28] sm:$0xf]
    %v755 = vld [vmem:[%s743 + $0x2c] sm:$0xf]
    %v756 = vld [vmem:[%s743 + $0x30] sm:$0xf]
    %v757 = vld [vmem:[%s743 + $0x34] sm:$0xf]
    %v758 = vld [vmem:[%s743 + $0x38] sm:$0xf]
    %v759 = vld [vmem:[%s743 + $0x3c] sm:$0xf]
    %v760 = vld [vmem:[#allocation7 + $0x6] sm:$0x1]
    %v762 = vlaneseq
    %v763 = vshrl.u32 %v762, 7
    %v764 = vsub.s32 0, %v763
    %v765 = vrot.slane %v760, %v764
    %v783 = vunpack.c.l.b16 %v744
    %v784 = vunpack.c.l.b16 %v745
    %v785 = vunpack.c.l.b16 %v746
    %v786 = vunpack.c.l.b16 %v747
    %v787 = vunpack.c.l.b16 %v748
    %v788 = vunpack.c.l.b16 %v749
    %v789 = vunpack.c.l.b16 %v750
    %v790 = vunpack.c.l.b16 %v751
    %v791 = vunpack.c.l.b16 %v752
    %v792 = vunpack.c.l.b16 %v753
    %v793 = vunpack.c.l.b16 %v754
    %v794 = vunpack.c.l.b16 %v755
    %v795 = vunpack.c.l.b16 %v756
    %v796 = vunpack.c.l.b16 %v757
    %v797 = vunpack.c.l.b16 %v758
    %v798 = vunpack.c.l.b16 %v759
    %v799 = vpack.c.b16 %v784, %v783
    %v800 = vpack.c.b16 %v786, %v785
    %v801 = vpack.c.b16 %v788, %v787
    %v802 = vpack.c.b16 %v790, %v789
    %v803 = vpack.c.b16 %v792, %v791
    %v804 = vpack.c.b16 %v794, %v793
    %v805 = vpack.c.b16 %v796, %v795
    %v806 = vpack.c.b16 %v798, %v797
    %815 = vmatprep.subr.bf16.mxu0 0
    %816 = vmatpush1.bf16.msra.mxu0 %v806
    %817 = vmatprep.subr.bf16.mxu0 0
    %818 = vmatpush1.bf16.msra.mxu0 %v805
    %819 = vmatprep.subr.bf16.mxu0 0
    %820 = vmatpush1.bf16.msra.mxu0 %v804
    %821 = vmatprep.subr.bf16.mxu0 0
    %822 = vmatpush1.bf16.msra.mxu0 %v803
    %823 = vmatprep.subr.bf16.mxu0 0
    %824 = vmatpush1.bf16.msra.mxu0 %v802
    %825 = vmatprep.subr.bf16.mxu0 0
    %826 = vmatpush1.bf16.msra.mxu0 %v801
    %827 = vmatprep.subr.bf16.mxu0 0
    %828 = vmatpush1.bf16.msra.mxu0 %v800
    %829 = vmatprep.subr.bf16.mxu0 0
    %830 = vmatpush1.bf16.msra.mxu0 %v799
    %831 = vmatprep.subr.bf16.mxu0 0
    %832 = vmatpush2.bf16.msra.mxu0 0
    %833 = vmatprep.subr.bf16.mxu0 0
    %834 = vmatpush2.bf16.msra.mxu0 0
    %835 = vmatprep.subr.bf16.mxu0 0
    %836 = vmatpush2.bf16.msra.mxu0 0
    %837 = vmatprep.subr.bf16.mxu0 0
    %838 = vmatpush2.bf16.msra.mxu0 0
    %839 = vmatprep.subr.bf16.mxu0 0
    %840 = vmatpush2.bf16.msra.mxu0 0
    %841 = vmatprep.subr.bf16.mxu0 0
    %842 = vmatpush2.bf16.msra.mxu0 0
    %843 = vmatprep.subr.bf16.mxu0 0
    %844 = vmatpush2.bf16.msra.mxu0 0
    %845 = vmatprep.subr.bf16.mxu0 0
    %846 = vmatpush2.bf16.msra.mxu0 0
    %847 = vmatprep.mubr.bf16.mxu0 0
    %848 = vmatmul.mubr.bf16.gmra.mxu0 %v742
    %v849 = vpop.f32.mrf.mxu0
    %v850 = vadd.f32 %v765, %v849
    %v851 = vpop.f32.mrf.mxu0
    %v852 = vpop.f32.mrf.mxu0
    %v853 = vpop.f32.mrf.mxu0
    %854 = vdwg.mxu0
    %v855 = vmax.f32 %v850, 0.0
    %856 = vst [vmem:[#allocation8 + $0x30] sm:$0xff] %v855
    %v857 = vld [vmem:[#allocation2 + $0x1c] sm:$0xf]
    %s858 = scalar_lea.vmem [#allocation5], 448
    %v859 = vld [vmem:[%s858] sm:$0xf]
    %v860 = vld [vmem:[%s858 + $0x4] sm:$0xf]
    %v861 = vld [vmem:[%s858 + $0x8] sm:$0xf]
    %v862 = vld [vmem:[%s858 + $0xc] sm:$0xf]
    %v863 = vld [vmem:[%s858 + $0x10] sm:$0xf]
    %v864 = vld [vmem:[%s858 + $0x14] sm:$0xf]
    %v865 = vld [vmem:[%s858 + $0x18] sm:$0xf]
    %v866 = vld [vmem:[%s858 + $0x1c] sm:$0xf]
    %v867 = vld [vmem:[%s858 + $0x20] sm:$0xf]
    %v868 = vld [vmem:[%s858 + $0x24] sm:$0xf]
    %v869 = vld [vmem:[%s858 + $0x28] sm:$0xf]
    %v870 = vld [vmem:[%s858 + $0x2c] sm:$0xf]
    %v871 = vld [vmem:[%s858 + $0x30] sm:$0xf]
    %v872 = vld [vmem:[%s858 + $0x34] sm:$0xf]
    %v873 = vld [vmem:[%s858 + $0x38] sm:$0xf]
    %v874 = vld [vmem:[%s858 + $0x3c] sm:$0xf]
    %v875 = vld [vmem:[#allocation7 + $0x7] sm:$0x1]
    %v877 = vlaneseq
    %v878 = vshrl.u32 %v877, 7
    %v879 = vsub.s32 0, %v878
    %v880 = vrot.slane %v875, %v879
    %v898 = vunpack.c.l.b16 %v859
    %v899 = vunpack.c.l.b16 %v860
    %v900 = vunpack.c.l.b16 %v861
    %v901 = vunpack.c.l.b16 %v862
    %v902 = vunpack.c.l.b16 %v863
    %v903 = vunpack.c.l.b16 %v864
    %v904 = vunpack.c.l.b16 %v865
    %v905 = vunpack.c.l.b16 %v866
    %v906 = vunpack.c.l.b16 %v867
    %v907 = vunpack.c.l.b16 %v868
    %v908 = vunpack.c.l.b16 %v869
    %v909 = vunpack.c.l.b16 %v870
    %v910 = vunpack.c.l.b16 %v871
    %v911 = vunpack.c.l.b16 %v872
    %v912 = vunpack.c.l.b16 %v873
    %v913 = vunpack.c.l.b16 %v874
    %v914 = vpack.c.b16 %v899, %v898
    %v915 = vpack.c.b16 %v901, %v900
    %v916 = vpack.c.b16 %v903, %v902
    %v917 = vpack.c.b16 %v905, %v904
    %v918 = vpack.c.b16 %v907, %v906
    %v919 = vpack.c.b16 %v909, %v908
    %v920 = vpack.c.b16 %v911, %v910
    %v921 = vpack.c.b16 %v913, %v912
    %930 = vmatprep.subr.bf16.mxu0 0
    %931 = vmatpush1.bf16.msra.mxu0 %v921
    %932 = vmatprep.subr.bf16.mxu0 0
    %933 = vmatpush1.bf16.msra.mxu0 %v920
    %934 = vmatprep.subr.bf16.mxu0 0
    %935 = vmatpush1.bf16.msra.mxu0 %v919
    %936 = vmatprep.subr.bf16.mxu0 0
    %937 = vmatpush1.bf16.msra.mxu0 %v918
    %938 = vmatprep.subr.bf16.mxu0 0
    %939 = vmatpush1.bf16.msra.mxu0 %v917
    %940 = vmatprep.subr.bf16.mxu0 0
    %941 = vmatpush1.bf16.msra.mxu0 %v916
    %942 = vmatprep.subr.bf16.mxu0 0
    %943 = vmatpush1.bf16.msra.mxu0 %v915
    %944 = vmatprep.subr.bf16.mxu0 0
    %945 = vmatpush1.bf16.msra.mxu0 %v914
    %946 = vmatprep.subr.bf16.mxu0 0
    %947 = vmatpush2.bf16.msra.mxu0 0
    %948 = vmatprep.subr.bf16.mxu0 0
    %949 = vmatpush2.bf16.msra.mxu0 0
    %950 = vmatprep.subr.bf16.mxu0 0
    %951 = vmatpush2.bf16.msra.mxu0 0
    %952 = vmatprep.subr.bf16.mxu0 0
    %953 = vmatpush2.bf16.msra.mxu0 0
    %954 = vmatprep.subr.bf16.mxu0 0
    %955 = vmatpush2.bf16.msra.mxu0 0
    %956 = vmatprep.subr.bf16.mxu0 0
    %957 = vmatpush2.bf16.msra.mxu0 0
    %958 = vmatprep.subr.bf16.mxu0 0
    %959 = vmatpush2.bf16.msra.mxu0 0
    %960 = vmatprep.subr.bf16.mxu0 0
    %961 = vmatpush2.bf16.msra.mxu0 0
    %962 = vmatprep.mubr.bf16.mxu0 0
    %963 = vmatmul.mubr.bf16.gmra.mxu0 %v857
    %v964 = vpop.f32.mrf.mxu0
    %v965 = vadd.f32 %v880, %v964
    %v966 = vpop.f32.mrf.mxu0
    %v967 = vpop.f32.mrf.mxu0
    %v968 = vpop.f32.mrf.mxu0
    %969 = vdwg.mxu0
    %v970 = vmax.f32 %v965, 0.0
    %971 = vst [vmem:[#allocation8 + $0x38] sm:$0xff] %v970
    // Predicated region
    $region26: #{tpu_custom_call.1} parent=1 // pred_check
      _
    $region27: #{tpu_custom_call.1} parent=1 // pred_check_branch
      %973 = sbr.rel (0) target = $region29
    $region28: #{tpu_custom_call.1} parent=1 // pred_region
      %s975 = ssub.s32 1024, 1024
      %976 = vsyncadd [#allocation4], %s975
      %s978 = sshll.u32 [#allocation8], 4
      %s979 = int_to_ptr.vmem [resolvable:$true] %s978
      %981 = dma.vmem_to_hbm [thread:$0]  %s979, 1024, %s3, [#allocation4]
    $region29: #{tpu_custom_call.1} parent=1 // pred_fallthru
      _
    // Predicated region
    $region30: #{tpu_custom_call.1} parent=1 // pred_check
      _
    $region31: #{tpu_custom_call.1} parent=1 // pred_check_branch
      %983 = sbr.rel (0) target = $region33
    $region32: #{tpu_custom_call.1} parent=1 // pred_region
      %984 = dma.done [#allocation4], 1024
    $region33: #{tpu_custom_call.1} parent=1 // pred_fallthru
      _
    %985 = vsyncpa [#allocation3], 1
    %986 = vsyncpa [#allocation6], 1
    %987 = vsyncpa [#allocation4], 1

</llo_original>
